<compile_context>
chip_gen: v5e
topology: v5e:2x2
jax: 0.10.0
libtpu: 0.0.40
codegen_flags: <defaults>
</compile_context>

<pallas_src>
import functools

import numpy as np
import jax
import jax.numpy as jnp
from jax.experimental import pallas as pl
from jax.experimental.pallas import tpu as pltpu


# ----------------------------------------------------------------------------
# Fused kernel: embedding + PE add + encoder layer + PReLU/Conv1d(F,1,1)/Sigmoid
# ----------------------------------------------------------------------------
def _disc_kernel(x_ref, w_emb_ref, pe_ref, w_qkv_ref, b_qkv_ref, wo_ref,
                 w1_ref, b1_ref, w2_ref, vecs_ref, wfcn_ref, sel_ref, scal_ref,
                 out_ref, *, nheads, batch, seq):
    B, S, H = batch, seq, nheads
    D = wo_ref.shape[0]
    hd = D // H

    # ---- embedding: Conv1d(F, F, 1) == dense F x F linear.  One wide,
    # lane-dense MXU matmul; relayout (B, S*D) -> (B*S, D) is done with
    # register slices + a single concatenate (no scratch, no masked stores).
    emb = jnp.dot(x_ref[...], w_emb_ref[...],
                  preferred_element_type=jnp.float32)             # (B, F)
    y = jnp.concatenate(
        [emb[b:b + 1, s * D:(s + 1) * D] for b in range(B) for s in range(S)],
        axis=0)                                                   # (B*S, D)
    # pe_ref already holds (positional embedding + conv bias), tiled over B.
    y = y + pe_ref[...]

    # ---- fused Q|K|V projection: one (B*S, D) @ (D, 3D) matmul ----
    qkv = jnp.dot(y, w_qkv_ref[...],
                  preferred_element_type=jnp.float32) + b_qkv_ref[...]   # (B*S, 3D)

    # ---- batched multi-head self-attention (dropout = identity in eval) ----
    def gather(base):
        # (H*B, S, hd) with batch index h*B + b, built from register slices.
        return jnp.concatenate(
            [qkv[b * S:(b + 1) * S, base + h * hd: base + (h + 1) * hd][None]
             for h in range(H) for b in range(B)], axis=0)
    qh, kh, vh = gather(0), gather(D), gather(2 * D)

    scale = 1.0 / float(np.sqrt(hd))
    sc = jnp.einsum('bqd,bkd->bqk', qh, kh,
                    preferred_element_type=jnp.float32) * scale   # (H*B, S, S)
    sc = sc - jnp.max(sc, axis=-1, keepdims=True)
    e = jnp.exp(sc)
    # EUP approximate reciprocal (free slot) instead of a VALU divide.
    p = e * pl.reciprocal(jnp.sum(e, axis=-1, keepdims=True), approx=True)
    o = jnp.einsum('bqk,bkd->bqd', p, vh,
                   preferred_element_type=jnp.float32)            # (H*B, S, hd)

    # concat heads back to (B*S, D) in registers; single Wo matmul
    attn_cat = jnp.concatenate(
        [jnp.concatenate([o[h * B + b] for h in range(H)], axis=-1)
         for b in range(B)], axis=0)                              # (B*S, D)

    # ---- unpack packed small parameter vectors / SMEM scalars ----
    bo, ln1g, ln1b = vecs_ref[0:1, :], vecs_ref[1:2, :], vecs_ref[2:3, :]
    b2, ln2g, ln2b = vecs_ref[3:4, :], vecs_ref[4:5, :], vecs_ref[5:6, :]
    alpha = scal_ref[0]          # PReLU alpha (SMEM scalar)
    bfcn = scal_ref[1]           # Conv1d(F, 1, 1) bias (SMEM scalar)

    attn = jnp.dot(attn_cat, wo_ref[...],
                   preferred_element_type=jnp.float32) + bo       # (B*S, D)

    def layer_norm(t, g, bvec, eps=1e-5):
        mu = jnp.mean(t, axis=-1, keepdims=True)
        var = jnp.mean((t - mu) ** 2, axis=-1, keepdims=True)
        return (t - mu) * jax.lax.rsqrt(var + eps) * g + bvec

    y1 = layer_norm(y + attn, ln1g, ln1b)

    # ---- feed-forward ----
    h1 = jnp.maximum(
        jnp.dot(y1, w1_ref[...], preferred_element_type=jnp.float32) + b1_ref[...],
        0.0)
    ff = jnp.dot(h1, w2_ref[...], preferred_element_type=jnp.float32) + b2
    y2 = layer_norm(y1 + ff, ln2g, ln2b)

    # ---- head: PReLU -> Dropout(identity) -> Conv1d(F, 1, 1) -> Sigmoid ----
    z = jnp.where(y2 > 0, y2, alpha * y2)                         # (B*S, D)
    row = jnp.sum(z * wfcn_ref[...], axis=-1, keepdims=True)      # (B*S, 1)
    logits = jnp.dot(sel_ref[...], row,
                     preferred_element_type=jnp.float32) + bfcn   # (B, 1)
    out_ref[...] = jax.nn.sigmoid(logits)


# ----------------------------------------------------------------------------
# Wrapper: parameter packing (glue) + single pallas_call
# ----------------------------------------------------------------------------
def discriminator_forward(x, params, *, nheads):
    B, S, D = x.shape
    F = S * D
    DFF = params["w1"].shape[1]
    x_flat = x.reshape(B, F)                                      # view

    # -- JAX-level glue: fold biases, fuse QKV, tile per-row params --
    pe_t = jnp.tile(params["pe"] + params["b_emb"].reshape(S, D), (B, 1))     # (B*S, D)
    w_qkv = jnp.concatenate([params["wq"], params["wk"], params["wv"]], axis=1)   # (D, 3D)
    b_qkv = jnp.concatenate([params["bq"], params["bk"], params["bv"]], axis=1)   # (1, 3D)
    vecs = jnp.concatenate(
        [params["bo"], params["ln1_g"], params["ln1_b"], params["b2"],
         params["ln2_g"], params["ln2_b"]], axis=0)                           # (6, D)
    wfcn_t = jnp.tile(params["w_fcn"], (B, 1))                                # (B*S, D)
    # batch selection matrix for the final per-batch sum: sel[b, r] = (r//S == b)
    sel = (jnp.arange(B * S)[None, :] // S
           == jnp.arange(B)[:, None]).astype(jnp.float32)                    # (B, B*S)
    # scalars go on the scalar path (SMEM)
    scal = jnp.concatenate([params["prelu"].reshape(1),
                            params["b_fcn"].reshape(1)])                     # (2,)

    kernel = functools.partial(_disc_kernel, nheads=nheads, batch=B, seq=S)
    full = lambda shape: pl.BlockSpec(shape, lambda i, _s=shape: (0,) * len(_s))

    out = pl.pallas_call(
        kernel,
        out_shape=jax.ShapeDtypeStruct((B, 1), jnp.float32),
        grid=(1,),
        in_specs=[
            full((B, F)),           # x (flattened)
            full((F, F)),           # embedding weight, lane-dense
            full((B * S, D)),       # positional embedding + conv bias, tiled
            full((D, 3 * D)),       # fused QKV weight
            full((1, 3 * D)),       # fused QKV bias
            full((D, D)),           # attention output projection
            full((D, DFF)),         # FFN w1
            full((1, DFF)),         # FFN b1
            full((DFF, D)),         # FFN w2
            full((6, D)),           # packed small D-wide vectors
            full((B * S, D)),       # Conv1d(F, 1, 1) head weight, tiled
            full((B, B * S)),       # batch selection matrix
            pl.BlockSpec(memory_space=pltpu.MemorySpace.SMEM),  # [alpha, b_fcn]
        ],
        out_specs=full((B, 1)),
        compiler_params=pltpu.CompilerParams(
            dimension_semantics=("arbitrary",)),
    )(x_flat, params["w_emb"], pe_t, w_qkv, b_qkv, params["wo"],
      params["w1"], params["b1"], params["w2"], vecs, wfcn_t, sel, scal)

    return out.reshape(B, 1, 1)


# ----------------------------------------------------------------------------
# Parameter / PE construction (deterministic, synthetic)
# ----------------------------------------------------------------------------
# TODO(synk): dataset.generate_pe source not provided; standard sinusoidal PE
# with the given `period` is used instead.
def generate_pe(seq_len, d_model, period):
    pos = np.arange(seq_len, dtype=np.float32)[:, None]
    i = np.arange(d_model, dtype=np.float32)[None, :]
    angle = pos / (float(period) ** ((2.0 * np.floor(i / 2.0)) / d_model))
    pe = np.where((np.arange(d_model)[None, :] % 2) == 0,
                  np.sin(angle), np.cos(angle))
    return jnp.asarray(pe, jnp.float32)


def init_params(key, S, D, DFF, period):
    F = S * D
    ks = jax.random.split(key, 12)

    def w(k, shape, scale=0.05):
        return scale * jax.random.normal(k, shape, dtype=jnp.float32)

    return dict(
        w_emb=w(ks[0], (F, F), 0.02),                 # Conv1d(F, F, 1), as (in, out)
        b_emb=w(ks[1], (1, F)),
        pe=generate_pe(S, D, period),
        wq=w(ks[2], (D, D)), bq=jnp.zeros((1, D), jnp.float32),
        wk=w(ks[3], (D, D)), bk=jnp.zeros((1, D), jnp.float32),
        wv=w(ks[4], (D, D)), bv=jnp.zeros((1, D), jnp.float32),
        wo=w(ks[5], (D, D)), bo=jnp.zeros((1, D), jnp.float32),
        ln1_g=jnp.ones((1, D), jnp.float32), ln1_b=jnp.zeros((1, D), jnp.float32),
        w1=w(ks[6], (D, DFF)), b1=w(ks[7], (1, DFF)),
        w2=w(ks[8], (DFF, D)), b2=w(ks[9], (1, D)),
        ln2_g=jnp.ones((1, D), jnp.float32), ln2_b=jnp.zeros((1, D), jnp.float32),
        prelu=jnp.full((1, 1), 0.25, jnp.float32),    # PyTorch PReLU default init
        w_fcn=w(ks[10], (S, D)),                      # Conv1d(F, 1, 1) weight viewed (S, D)
        b_fcn=w(ks[11], (1, 1)),
    )


# ----------------------------------------------------------------------------
# Pure-JAX reference (same math, for correctness check)
# ----------------------------------------------------------------------------
def reference_forward(x, params, *, nheads):
    B, S, D = x.shape
    F = S * D
    hd = D // nheads
    y = x.reshape(B, F) @ params["w_emb"] + params["b_emb"]
    y = y.reshape(B, S, D) + params["pe"][None]
    q = y @ params["wq"] + params["bq"]
    k = y @ params["wk"] + params["bk"]
    v = y @ params["wv"] + params["bv"]
    qh = q.reshape(B, S, nheads, hd)
    kh = k.reshape(B, S, nheads, hd)
    vh = v.reshape(B, S, nheads, hd)
    s = jnp.einsum("bqhd,bkhd->bhqk", qh, kh) / jnp.sqrt(float(hd))
    p = jax.nn.softmax(s, axis=-1)
    o = jnp.einsum("bhqk,bkhd->bqhd", p, vh).reshape(B, S, D)
    attn = o @ params["wo"] + params["bo"]

    def ln(t, g, b, eps=1e-5):
        mu = t.mean(-1, keepdims=True)
        var = ((t - mu) ** 2).mean(-1, keepdims=True)
        return (t - mu) / jnp.sqrt(var + eps) * g + b

    y = ln(y + attn, params["ln1_g"], params["ln1_b"])
    h1 = jax.nn.relu(y @ params["w1"] + params["b1"])
    ff = h1 @ params["w2"] + params["b2"]
    y = ln(y + ff, params["ln2_g"], params["ln2_b"])
    a = params["prelu"][0, 0]
    z = jnp.where(y > 0, y, a * y)
    logit = jnp.einsum("bsd,sd->b", z, params["w_fcn"]) + params["b_fcn"][0, 0]
    return jax.nn.sigmoid(logit).reshape(B, 1, 1)


if __name__ == "__main__":
    # Small shapes consistent with the module: input_size=(S, D)=(8, 32),
    # nheads=4, dim_feedforward=64, period=10, batch=2.
    # TODO(synk): EncodeLayer source not provided; implemented as a standard
    # post-norm TransformerEncoderLayer (MHA + add&norm + FFN + add&norm).
    B, S, D = 2, 8, 32
    NHEADS, DFF, PERIOD = 4, 64, 10

    key = jax.random.PRNGKey(0)
    kx, kp = jax.random.split(key)
    x = jax.random.normal(kx, (B, S, D), dtype=jnp.float32)
    params = init_params(kp, S, D, DFF, PERIOD)

    out = discriminator_forward(x, params, nheads=NHEADS)
    out = jax.block_until_ready(out)

    ref = reference_forward(x, params, nheads=NHEADS)
    # Slightly looser tolerance than before: softmax uses the EUP approximate
    # reciprocal (pl.reciprocal(..., approx=True)) per the perf review.
    np.testing.assert_allclose(np.asarray(out), np.asarray(ref),
                               rtol=2e-3, atol=2e-4)
    assert out.shape == (B, 1, 1)
    print("KERNEL_OK")
</pallas_src>

<mosaic_0001>
module attributes {stable_mosaic.version = 11 : i64} {
  func.func @_disc_kernel(%arg0: i32, %arg1: memref<2x256xf32, #tpu.memory_space<vmem>>, %arg2: memref<256x256xf32, #tpu.memory_space<vmem>>, %arg3: memref<16x32xf32, #tpu.memory_space<vmem>>, %arg4: memref<32x96xf32, #tpu.memory_space<vmem>>, %arg5: memref<1x96xf32, #tpu.memory_space<vmem>>, %arg6: memref<32x32xf32, #tpu.memory_space<vmem>>, %arg7: memref<32x64xf32, #tpu.memory_space<vmem>>, %arg8: memref<1x64xf32, #tpu.memory_space<vmem>>, %arg9: memref<64x32xf32, #tpu.memory_space<vmem>>, %arg10: memref<6x32xf32, #tpu.memory_space<vmem>>, %arg11: memref<16x32xf32, #tpu.memory_space<vmem>>, %arg12: memref<2x16xf32, #tpu.memory_space<vmem>>, %arg13: memref<2xf32, #tpu.memory_space<smem>>, %arg14: memref<2x1xf32, #tpu.memory_space<vmem>>) attributes {dimension_semantics = [#tpu.dimension_semantics<arbitrary>], iteration_bounds = array<i64: 1>, scalar_prefetch = 0 : i64, scratch_operands = 0 : i64, tpu.core_type = #tpu.core_type<tc>, window_params = [{pipeline_mode = #tpu.pipeline_mode<synchronous>, transform_indices = @transform_0, window_bounds = array<i64: 2, 256>}, {pipeline_mode = #tpu.pipeline_mode<synchronous>, transform_indices = @transform_1, window_bounds = array<i64: 256, 256>}, {pipeline_mode = #tpu.pipeline_mode<synchronous>, transform_indices = @transform_2, window_bounds = array<i64: 16, 32>}, {pipeline_mode = #tpu.pipeline_mode<synchronous>, transform_indices = @transform_3, window_bounds = array<i64: 32, 96>}, {pipeline_mode = #tpu.pipeline_mode<synchronous>, transform_indices = @transform_4, window_bounds = array<i64: 1, 96>}, {pipeline_mode = #tpu.pipeline_mode<synchronous>, transform_indices = @transform_5, window_bounds = array<i64: 32, 32>}, {pipeline_mode = #tpu.pipeline_mode<synchronous>, transform_indices = @transform_6, window_bounds = array<i64: 32, 64>}, {pipeline_mode = #tpu.pipeline_mode<synchronous>, transform_indices = @transform_7, window_bounds = array<i64: 1, 64>}, {pipeline_mode = #tpu.pipeline_mode<synchronous>, transform_indices = @transform_8, window_bounds = array<i64: 64, 32>}, {pipeline_mode = #tpu.pipeline_mode<synchronous>, transform_indices = @transform_9, window_bounds = array<i64: 6, 32>}, {pipeline_mode = #tpu.pipeline_mode<synchronous>, transform_indices = @transform_10, window_bounds = array<i64: 16, 32>}, {pipeline_mode = #tpu.pipeline_mode<synchronous>, transform_indices = @transform_11, window_bounds = array<i64: 2, 16>}, {transform_indices = @transform_12, window_bounds = array<i64: 2>}, {pipeline_mode = #tpu.pipeline_mode<synchronous>, transform_indices = @transform_13, window_bounds = array<i64: 2, 1>}]} {
    %c0 = arith.constant 0 : index
    %c0_0 = arith.constant 0 : index
    %0 = vector.load %arg1[%c0, %c0_0] : memref<2x256xf32, #tpu.memory_space<vmem>>, vector<2x256xf32>
    %c0_1 = arith.constant 0 : index
    %c0_2 = arith.constant 0 : index
    %1 = vector.load %arg2[%c0_1, %c0_2] : memref<256x256xf32, #tpu.memory_space<vmem>>, vector<256x256xf32>
    %cst = arith.constant dense<0.000000e+00> : vector<2x256xf32>
    %2 = tpu.matmul %0, %1, %cst {dimension_numbers = #tpu.dot_dimension_numbers<[1], [0], [0], [1], [0, 0, 1, 1], [], []>} : vector<2x256xf32>, vector<256x256xf32>, vector<2x256xf32> -> vector<2x256xf32>
    %3 = vector.extract_strided_slice %2 {offsets = [0, 0], sizes = [1, 32], strides = [1, 1]} : vector<2x256xf32> to vector<1x32xf32>
    %4 = vector.extract_strided_slice %2 {offsets = [0, 32], sizes = [1, 32], strides = [1, 1]} : vector<2x256xf32> to vector<1x32xf32>
    %5 = vector.extract_strided_slice %2 {offsets = [0, 64], sizes = [1, 32], strides = [1, 1]} : vector<2x256xf32> to vector<1x32xf32>
    %6 = vector.extract_strided_slice %2 {offsets = [0, 96], sizes = [1, 32], strides = [1, 1]} : vector<2x256xf32> to vector<1x32xf32>
    %7 = vector.extract_strided_slice %2 {offsets = [0, 128], sizes = [1, 32], strides = [1, 1]} : vector<2x256xf32> to vector<1x32xf32>
    %8 = vector.extract_strided_slice %2 {offsets = [0, 160], sizes = [1, 32], strides = [1, 1]} : vector<2x256xf32> to vector<1x32xf32>
    %9 = vector.extract_strided_slice %2 {offsets = [0, 192], sizes = [1, 32], strides = [1, 1]} : vector<2x256xf32> to vector<1x32xf32>
    %10 = vector.extract_strided_slice %2 {offsets = [0, 224], sizes = [1, 32], strides = [1, 1]} : vector<2x256xf32> to vector<1x32xf32>
    %11 = vector.extract_strided_slice %2 {offsets = [1, 0], sizes = [1, 32], strides = [1, 1]} : vector<2x256xf32> to vector<1x32xf32>
    %12 = vector.extract_strided_slice %2 {offsets = [1, 32], sizes = [1, 32], strides = [1, 1]} : vector<2x256xf32> to vector<1x32xf32>
    %13 = vector.extract_strided_slice %2 {offsets = [1, 64], sizes = [1, 32], strides = [1, 1]} : vector<2x256xf32> to vector<1x32xf32>
    %14 = vector.extract_strided_slice %2 {offsets = [1, 96], sizes = [1, 32], strides = [1, 1]} : vector<2x256xf32> to vector<1x32xf32>
    %15 = vector.extract_strided_slice %2 {offsets = [1, 128], sizes = [1, 32], strides = [1, 1]} : vector<2x256xf32> to vector<1x32xf32>
    %16 = vector.extract_strided_slice %2 {offsets = [1, 160], sizes = [1, 32], strides = [1, 1]} : vector<2x256xf32> to vector<1x32xf32>
    %17 = vector.extract_strided_slice %2 {offsets = [1, 192], sizes = [1, 32], strides = [1, 1]} : vector<2x256xf32> to vector<1x32xf32>
    %18 = vector.extract_strided_slice %2 {offsets = [1, 224], sizes = [1, 32], strides = [1, 1]} : vector<2x256xf32> to vector<1x32xf32>
    %19 = tpu.concatenate %3, %4, %5, %6, %7, %8, %9, %10, %11, %12, %13, %14, %15, %16, %17, %18 in 0 : vector<1x32xf32>, vector<1x32xf32>, vector<1x32xf32>, vector<1x32xf32>, vector<1x32xf32>, vector<1x32xf32>, vector<1x32xf32>, vector<1x32xf32>, vector<1x32xf32>, vector<1x32xf32>, vector<1x32xf32>, vector<1x32xf32>, vector<1x32xf32>, vector<1x32xf32>, vector<1x32xf32>, vector<1x32xf32> -> vector<16x32xf32>
    %c0_3 = arith.constant 0 : index
    %c0_4 = arith.constant 0 : index
    %20 = vector.load %arg3[%c0_3, %c0_4] : memref<16x32xf32, #tpu.memory_space<vmem>>, vector<16x32xf32>
    %21 = arith.addf %19, %20 : vector<16x32xf32>
    %c0_5 = arith.constant 0 : index
    %c0_6 = arith.constant 0 : index
    %22 = vector.load %arg4[%c0_5, %c0_6] : memref<32x96xf32, #tpu.memory_space<vmem>>, vector<32x96xf32>
    %cst_7 = arith.constant dense<0.000000e+00> : vector<16x96xf32>
    %23 = tpu.matmul %21, %22, %cst_7 {dimension_numbers = #tpu.dot_dimension_numbers<[1], [0], [0], [1], [0, 0, 1, 1], [], []>} : vector<16x32xf32>, vector<32x96xf32>, vector<16x96xf32> -> vector<16x96xf32>
    %c0_8 = arith.constant 0 : index
    %c0_9 = arith.constant 0 : index
    %24 = vector.load %arg5[%c0_8, %c0_9] : memref<1x96xf32, #tpu.memory_space<vmem>>, vector<1x96xf32>
    %25 = vector.broadcast %24 : vector<1x96xf32> to vector<16x96xf32>
    %26 = arith.addf %23, %25 : vector<16x96xf32>
    %27 = vector.extract_strided_slice %26 {offsets = [0, 0], sizes = [8, 8], strides = [1, 1]} : vector<16x96xf32> to vector<8x8xf32>
    %28 = vector.shape_cast %27 : vector<8x8xf32> to vector<1x8x8xf32>
    %29 = vector.extract_strided_slice %26 {offsets = [8, 0], sizes = [8, 8], strides = [1, 1]} : vector<16x96xf32> to vector<8x8xf32>
    %30 = vector.shape_cast %29 : vector<8x8xf32> to vector<1x8x8xf32>
    %31 = vector.extract_strided_slice %26 {offsets = [0, 8], sizes = [8, 8], strides = [1, 1]} : vector<16x96xf32> to vector<8x8xf32>
    %32 = vector.shape_cast %31 : vector<8x8xf32> to vector<1x8x8xf32>
    %33 = vector.extract_strided_slice %26 {offsets = [8, 8], sizes = [8, 8], strides = [1, 1]} : vector<16x96xf32> to vector<8x8xf32>
    %34 = vector.shape_cast %33 : vector<8x8xf32> to vector<1x8x8xf32>
    %35 = vector.extract_strided_slice %26 {offsets = [0, 16], sizes = [8, 8], strides = [1, 1]} : vector<16x96xf32> to vector<8x8xf32>
    %36 = vector.shape_cast %35 : vector<8x8xf32> to vector<1x8x8xf32>
    %37 = vector.extract_strided_slice %26 {offsets = [8, 16], sizes = [8, 8], strides = [1, 1]} : vector<16x96xf32> to vector<8x8xf32>
    %38 = vector.shape_cast %37 : vector<8x8xf32> to vector<1x8x8xf32>
    %39 = vector.extract_strided_slice %26 {offsets = [0, 24], sizes = [8, 8], strides = [1, 1]} : vector<16x96xf32> to vector<8x8xf32>
    %40 = vector.shape_cast %39 : vector<8x8xf32> to vector<1x8x8xf32>
    %41 = vector.extract_strided_slice %26 {offsets = [8, 24], sizes = [8, 8], strides = [1, 1]} : vector<16x96xf32> to vector<8x8xf32>
    %42 = vector.shape_cast %41 : vector<8x8xf32> to vector<1x8x8xf32>
    %43 = tpu.concatenate %28, %30, %32, %34, %36, %38, %40, %42 in 0 : vector<1x8x8xf32>, vector<1x8x8xf32>, vector<1x8x8xf32>, vector<1x8x8xf32>, vector<1x8x8xf32>, vector<1x8x8xf32>, vector<1x8x8xf32>, vector<1x8x8xf32> -> vector<8x8x8xf32>
    %44 = vector.extract_strided_slice %26 {offsets = [0, 32], sizes = [8, 8], strides = [1, 1]} : vector<16x96xf32> to vector<8x8xf32>
    %45 = vector.shape_cast %44 : vector<8x8xf32> to vector<1x8x8xf32>
    %46 = vector.extract_strided_slice %26 {offsets = [8, 32], sizes = [8, 8], strides = [1, 1]} : vector<16x96xf32> to vector<8x8xf32>
    %47 = vector.shape_cast %46 : vector<8x8xf32> to vector<1x8x8xf32>
    %48 = vector.extract_strided_slice %26 {offsets = [0, 40], sizes = [8, 8], strides = [1, 1]} : vector<16x96xf32> to vector<8x8xf32>
    %49 = vector.shape_cast %48 : vector<8x8xf32> to vector<1x8x8xf32>
    %50 = vector.extract_strided_slice %26 {offsets = [8, 40], sizes = [8, 8], strides = [1, 1]} : vector<16x96xf32> to vector<8x8xf32>
    %51 = vector.shape_cast %50 : vector<8x8xf32> to vector<1x8x8xf32>
    %52 = vector.extract_strided_slice %26 {offsets = [0, 48], sizes = [8, 8], strides = [1, 1]} : vector<16x96xf32> to vector<8x8xf32>
    %53 = vector.shape_cast %52 : vector<8x8xf32> to vector<1x8x8xf32>
    %54 = vector.extract_strided_slice %26 {offsets = [8, 48], sizes = [8, 8], strides = [1, 1]} : vector<16x96xf32> to vector<8x8xf32>
    %55 = vector.shape_cast %54 : vector<8x8xf32> to vector<1x8x8xf32>
    %56 = vector.extract_strided_slice %26 {offsets = [0, 56], sizes = [8, 8], strides = [1, 1]} : vector<16x96xf32> to vector<8x8xf32>
    %57 = vector.shape_cast %56 : vector<8x8xf32> to vector<1x8x8xf32>
    %58 = vector.extract_strided_slice %26 {offsets = [8, 56], sizes = [8, 8], strides = [1, 1]} : vector<16x96xf32> to vector<8x8xf32>
    %59 = vector.shape_cast %58 : vector<8x8xf32> to vector<1x8x8xf32>
    %60 = tpu.concatenate %45, %47, %49, %51, %53, %55, %57, %59 in 0 : vector<1x8x8xf32>, vector<1x8x8xf32>, vector<1x8x8xf32>, vector<1x8x8xf32>, vector<1x8x8xf32>, vector<1x8x8xf32>, vector<1x8x8xf32>, vector<1x8x8xf32> -> vector<8x8x8xf32>
    %61 = vector.extract_strided_slice %26 {offsets = [0, 64], sizes = [8, 8], strides = [1, 1]} : vector<16x96xf32> to vector<8x8xf32>
    %62 = vector.shape_cast %61 : vector<8x8xf32> to vector<1x8x8xf32>
    %63 = vector.extract_strided_slice %26 {offsets = [8, 64], sizes = [8, 8], strides = [1, 1]} : vector<16x96xf32> to vector<8x8xf32>
    %64 = vector.shape_cast %63 : vector<8x8xf32> to vector<1x8x8xf32>
    %65 = vector.extract_strided_slice %26 {offsets = [0, 72], sizes = [8, 8], strides = [1, 1]} : vector<16x96xf32> to vector<8x8xf32>
    %66 = vector.shape_cast %65 : vector<8x8xf32> to vector<1x8x8xf32>
    %67 = vector.extract_strided_slice %26 {offsets = [8, 72], sizes = [8, 8], strides = [1, 1]} : vector<16x96xf32> to vector<8x8xf32>
    %68 = vector.shape_cast %67 : vector<8x8xf32> to vector<1x8x8xf32>
    %69 = vector.extract_strided_slice %26 {offsets = [0, 80], sizes = [8, 8], strides = [1, 1]} : vector<16x96xf32> to vector<8x8xf32>
    %70 = vector.shape_cast %69 : vector<8x8xf32> to vector<1x8x8xf32>
    %71 = vector.extract_strided_slice %26 {offsets = [8, 80], sizes = [8, 8], strides = [1, 1]} : vector<16x96xf32> to vector<8x8xf32>
    %72 = vector.shape_cast %71 : vector<8x8xf32> to vector<1x8x8xf32>
    %73 = vector.extract_strided_slice %26 {offsets = [0, 88], sizes = [8, 8], strides = [1, 1]} : vector<16x96xf32> to vector<8x8xf32>
    %74 = vector.shape_cast %73 : vector<8x8xf32> to vector<1x8x8xf32>
    %75 = vector.extract_strided_slice %26 {offsets = [8, 88], sizes = [8, 8], strides = [1, 1]} : vector<16x96xf32> to vector<8x8xf32>
    %76 = vector.shape_cast %75 : vector<8x8xf32> to vector<1x8x8xf32>
    %77 = tpu.concatenate %62, %64, %66, %68, %70, %72, %74, %76 in 0 : vector<1x8x8xf32>, vector<1x8x8xf32>, vector<1x8x8xf32>, vector<1x8x8xf32>, vector<1x8x8xf32>, vector<1x8x8xf32>, vector<1x8x8xf32>, vector<1x8x8xf32> -> vector<8x8x8xf32>
    "tpu.trace_start"() <{level = 10 : i32, message = "bqd,bkd->bqk"}> : () -> ()
    %cst_10 = arith.constant dense<0.000000e+00> : vector<8x8x8xf32>
    %78 = tpu.matmul %43, %60, %cst_10 {dimension_numbers = #tpu.dot_dimension_numbers<[2], [2], [1], [1], [0, 0, 0, 1, 1, 1], [0], [0]>} : vector<8x8x8xf32>, vector<8x8x8xf32>, vector<8x8x8xf32> -> vector<8x8x8xf32>
    "tpu.trace_stop"() : () -> ()
    %cst_11 = arith.constant 0.353553385 : f32
    %79 = vector.broadcast %cst_11 : f32 to vector<8x8x8xf32>
    %80 = arith.mulf %78, %79 : vector<8x8x8xf32>
    %cst_12 = arith.constant dense<0xFF800000> : vector<8x8xf32>
    %81 = vector.multi_reduction <maximumf>, %80, %cst_12 [2] : vector<8x8x8xf32> to vector<8x8xf32>
    %82 = vector.shape_cast %81 : vector<8x8xf32> to vector<8x8x1xf32>
    %83 = vector.broadcast %82 : vector<8x8x1xf32> to vector<8x8x8xf32>
    %84 = arith.subf %80, %83 : vector<8x8x8xf32>
    %85 = math.exp %84 : vector<8x8x8xf32>
    %cst_13 = arith.constant dense<0.000000e+00> : vector<8x8xf32>
    %86 = vector.multi_reduction <add>, %85, %cst_13 [2] : vector<8x8x8xf32> to vector<8x8xf32>
    %87 = vector.shape_cast %86 : vector<8x8xf32> to vector<8x8x1xf32>
    %88 = tpu.reciprocal %87 {approx = true} : vector<8x8x1xf32> -> vector<8x8x1xf32>
    %89 = vector.broadcast %88 : vector<8x8x1xf32> to vector<8x8x8xf32>
    %90 = arith.mulf %85, %89 : vector<8x8x8xf32>
    "tpu.trace_start"() <{level = 10 : i32, message = "bqk,bkd->bqd"}> : () -> ()
    %cst_14 = arith.constant dense<0.000000e+00> : vector<8x8x8xf32>
    %91 = tpu.matmul %90, %77, %cst_14 {dimension_numbers = #tpu.dot_dimension_numbers<[2], [1], [1], [2], [0, 0, 0, 1, 1, 2], [0], [0]>} : vector<8x8x8xf32>, vector<8x8x8xf32>, vector<8x8x8xf32> -> vector<8x8x8xf32>
    "tpu.trace_stop"() : () -> ()
    %92 = vector.extract_strided_slice %91 {offsets = [0, 0, 0], sizes = [1, 8, 8], strides = [1, 1, 1]} : vector<8x8x8xf32> to vector<1x8x8xf32>
    %93 = vector.shape_cast %92 : vector<1x8x8xf32> to vector<8x8xf32>
    %94 = vector.extract_strided_slice %91 {offsets = [2, 0, 0], sizes = [1, 8, 8], strides = [1, 1, 1]} : vector<8x8x8xf32> to vector<1x8x8xf32>
    %95 = vector.shape_cast %94 : vector<1x8x8xf32> to vector<8x8xf32>
    %96 = vector.extract_strided_slice %91 {offsets = [4, 0, 0], sizes = [1, 8, 8], strides = [1, 1, 1]} : vector<8x8x8xf32> to vector<1x8x8xf32>
    %97 = vector.shape_cast %96 : vector<1x8x8xf32> to vector<8x8xf32>
    %98 = vector.extract_strided_slice %91 {offsets = [6, 0, 0], sizes = [1, 8, 8], strides = [1, 1, 1]} : vector<8x8x8xf32> to vector<1x8x8xf32>
    %99 = vector.shape_cast %98 : vector<1x8x8xf32> to vector<8x8xf32>
    %100 = tpu.concatenate %93, %95, %97, %99 in 1 : vector<8x8xf32>, vector<8x8xf32>, vector<8x8xf32>, vector<8x8xf32> -> vector<8x32xf32>
    %101 = vector.extract_strided_slice %91 {offsets = [1, 0, 0], sizes = [1, 8, 8], strides = [1, 1, 1]} : vector<8x8x8xf32> to vector<1x8x8xf32>
    %102 = vector.shape_cast %101 : vector<1x8x8xf32> to vector<8x8xf32>
    %103 = vector.extract_strided_slice %91 {offsets = [3, 0, 0], sizes = [1, 8, 8], strides = [1, 1, 1]} : vector<8x8x8xf32> to vector<1x8x8xf32>
    %104 = vector.shape_cast %103 : vector<1x8x8xf32> to vector<8x8xf32>
    %105 = vector.extract_strided_slice %91 {offsets = [5, 0, 0], sizes = [1, 8, 8], strides = [1, 1, 1]} : vector<8x8x8xf32> to vector<1x8x8xf32>
    %106 = vector.shape_cast %105 : vector<1x8x8xf32> to vector<8x8xf32>
    %107 = vector.extract_strided_slice %91 {offsets = [7, 0, 0], sizes = [1, 8, 8], strides = [1, 1, 1]} : vector<8x8x8xf32> to vector<1x8x8xf32>
    %108 = vector.shape_cast %107 : vector<1x8x8xf32> to vector<8x8xf32>
    %109 = tpu.concatenate %102, %104, %106, %108 in 1 : vector<8x8xf32>, vector<8x8xf32>, vector<8x8xf32>, vector<8x8xf32> -> vector<8x32xf32>
    %110 = tpu.concatenate %100, %109 in 0 : vector<8x32xf32>, vector<8x32xf32> -> vector<16x32xf32>
    %c0_15 = arith.constant 0 : index
    %c0_16 = arith.constant 0 : index
    %111 = vector.load %arg10[%c0_15, %c0_16] : memref<6x32xf32, #tpu.memory_space<vmem>>, vector<1x32xf32>
    %c1 = arith.constant 1 : index
    %c0_17 = arith.constant 0 : index
    %112 = vector.load %arg10[%c1, %c0_17] : memref<6x32xf32, #tpu.memory_space<vmem>>, vector<1x32xf32>
    %c2 = arith.constant 2 : index
    %c0_18 = arith.constant 0 : index
    %113 = vector.load %arg10[%c2, %c0_18] : memref<6x32xf32, #tpu.memory_space<vmem>>, vector<1x32xf32>
    %c3 = arith.constant 3 : index
    %c0_19 = arith.constant 0 : index
    %114 = vector.load %arg10[%c3, %c0_19] : memref<6x32xf32, #tpu.memory_space<vmem>>, vector<1x32xf32>
    %c4 = arith.constant 4 : index
    %c0_20 = arith.constant 0 : index
    %115 = vector.load %arg10[%c4, %c0_20] : memref<6x32xf32, #tpu.memory_space<vmem>>, vector<1x32xf32>
    %c5 = arith.constant 5 : index
    %c0_21 = arith.constant 0 : index
    %116 = vector.load %arg10[%c5, %c0_21] : memref<6x32xf32, #tpu.memory_space<vmem>>, vector<1x32xf32>
    %c0_22 = arith.constant 0 : index
    %117 = memref.load %arg13[%c0_22] : memref<2xf32, #tpu.memory_space<smem>>
    %c1_23 = arith.constant 1 : index
    %118 = memref.load %arg13[%c1_23] : memref<2xf32, #tpu.memory_space<smem>>
    %c0_24 = arith.constant 0 : index
    %c0_25 = arith.constant 0 : index
    %119 = vector.load %arg6[%c0_24, %c0_25] : memref<32x32xf32, #tpu.memory_space<vmem>>, vector<32x32xf32>
    %cst_26 = arith.constant dense<0.000000e+00> : vector<16x32xf32>
    %120 = tpu.matmul %110, %119, %cst_26 {dimension_numbers = #tpu.dot_dimension_numbers<[1], [0], [0], [1], [0, 0, 1, 1], [], []>} : vector<16x32xf32>, vector<32x32xf32>, vector<16x32xf32> -> vector<16x32xf32>
    %121 = vector.broadcast %111 : vector<1x32xf32> to vector<16x32xf32>
    %122 = arith.addf %120, %121 : vector<16x32xf32>
    %123 = arith.addf %21, %122 : vector<16x32xf32>
    %cst_27 = arith.constant dense<0.000000e+00> : vector<16xf32>
    %124 = vector.multi_reduction <add>, %123, %cst_27 [1] : vector<16x32xf32> to vector<16xf32>
    %125 = vector.shape_cast %124 : vector<16xf32> to vector<16x1xf32>
    %cst_28 = arith.constant 3.200000e+01 : f32
    %126 = vector.broadcast %cst_28 : f32 to vector<16x1xf32>
    %127 = arith.divf %125, %126 : vector<16x1xf32>
    %128 = vector.broadcast %127 : vector<16x1xf32> to vector<16x32xf32>
    %129 = arith.subf %123, %128 : vector<16x32xf32>
    %130 = arith.mulf %129, %129 : vector<16x32xf32>
    %cst_29 = arith.constant dense<0.000000e+00> : vector<16xf32>
    %131 = vector.multi_reduction <add>, %130, %cst_29 [1] : vector<16x32xf32> to vector<16xf32>
    %132 = vector.shape_cast %131 : vector<16xf32> to vector<16x1xf32>
    %cst_30 = arith.constant 3.200000e+01 : f32
    %133 = vector.broadcast %cst_30 : f32 to vector<16x1xf32>
    %134 = arith.divf %132, %133 : vector<16x1xf32>
    %135 = vector.broadcast %127 : vector<16x1xf32> to vector<16x32xf32>
    %136 = arith.subf %123, %135 : vector<16x32xf32>
    %cst_31 = arith.constant 9.99999974E-6 : f32
    %137 = vector.broadcast %cst_31 : f32 to vector<16x1xf32>
    %138 = arith.addf %134, %137 : vector<16x1xf32>
    %139 = math.rsqrt %138 : vector<16x1xf32>
    %140 = vector.broadcast %139 : vector<16x1xf32> to vector<16x32xf32>
    %141 = arith.mulf %136, %140 : vector<16x32xf32>
    %142 = vector.broadcast %112 : vector<1x32xf32> to vector<16x32xf32>
    %143 = arith.mulf %141, %142 : vector<16x32xf32>
    %144 = vector.broadcast %113 : vector<1x32xf32> to vector<16x32xf32>
    %145 = arith.addf %143, %144 : vector<16x32xf32>
    %c0_32 = arith.constant 0 : index
    %c0_33 = arith.constant 0 : index
    %146 = vector.load %arg7[%c0_32, %c0_33] : memref<32x64xf32, #tpu.memory_space<vmem>>, vector<32x64xf32>
    %cst_34 = arith.constant dense<0.000000e+00> : vector<16x64xf32>
    %147 = tpu.matmul %145, %146, %cst_34 {dimension_numbers = #tpu.dot_dimension_numbers<[1], [0], [0], [1], [0, 0, 1, 1], [], []>} : vector<16x32xf32>, vector<32x64xf32>, vector<16x64xf32> -> vector<16x64xf32>
    %c0_35 = arith.constant 0 : index
    %c0_36 = arith.constant 0 : index
    %148 = vector.load %arg8[%c0_35, %c0_36] : memref<1x64xf32, #tpu.memory_space<vmem>>, vector<1x64xf32>
    %149 = vector.broadcast %148 : vector<1x64xf32> to vector<16x64xf32>
    %150 = arith.addf %147, %149 : vector<16x64xf32>
    %cst_37 = arith.constant 0.000000e+00 : f32
    %151 = vector.broadcast %cst_37 : f32 to vector<16x64xf32>
    %152 = arith.maximumf %150, %151 : vector<16x64xf32>
    %c0_38 = arith.constant 0 : index
    %c0_39 = arith.constant 0 : index
    %153 = vector.load %arg9[%c0_38, %c0_39] : memref<64x32xf32, #tpu.memory_space<vmem>>, vector<64x32xf32>
    %cst_40 = arith.constant dense<0.000000e+00> : vector<16x32xf32>
    %154 = tpu.matmul %152, %153, %cst_40 {dimension_numbers = #tpu.dot_dimension_numbers<[1], [0], [0], [1], [0, 0, 1, 1], [], []>} : vector<16x64xf32>, vector<64x32xf32>, vector<16x32xf32> -> vector<16x32xf32>
    %155 = vector.broadcast %114 : vector<1x32xf32> to vector<16x32xf32>
    %156 = arith.addf %154, %155 : vector<16x32xf32>
    %157 = arith.addf %145, %156 : vector<16x32xf32>
    %cst_41 = arith.constant dense<0.000000e+00> : vector<16xf32>
    %158 = vector.multi_reduction <add>, %157, %cst_41 [1] : vector<16x32xf32> to vector<16xf32>
    %159 = vector.shape_cast %158 : vector<16xf32> to vector<16x1xf32>
    %cst_42 = arith.constant 3.200000e+01 : f32
    %160 = vector.broadcast %cst_42 : f32 to vector<16x1xf32>
    %161 = arith.divf %159, %160 : vector<16x1xf32>
    %162 = vector.broadcast %161 : vector<16x1xf32> to vector<16x32xf32>
    %163 = arith.subf %157, %162 : vector<16x32xf32>
    %164 = arith.mulf %163, %163 : vector<16x32xf32>
    %cst_43 = arith.constant dense<0.000000e+00> : vector<16xf32>
    %165 = vector.multi_reduction <add>, %164, %cst_43 [1] : vector<16x32xf32> to vector<16xf32>
    %166 = vector.shape_cast %165 : vector<16xf32> to vector<16x1xf32>
    %cst_44 = arith.constant 3.200000e+01 : f32
    %167 = vector.broadcast %cst_44 : f32 to vector<16x1xf32>
    %168 = arith.divf %166, %167 : vector<16x1xf32>
    %169 = vector.broadcast %161 : vector<16x1xf32> to vector<16x32xf32>
    %170 = arith.subf %157, %169 : vector<16x32xf32>
    %cst_45 = arith.constant 9.99999974E-6 : f32
    %171 = vector.broadcast %cst_45 : f32 to vector<16x1xf32>
    %172 = arith.addf %168, %171 : vector<16x1xf32>
    %173 = math.rsqrt %172 : vector<16x1xf32>
    %174 = vector.broadcast %173 : vector<16x1xf32> to vector<16x32xf32>
    %175 = arith.mulf %170, %174 : vector<16x32xf32>
    %176 = vector.broadcast %115 : vector<1x32xf32> to vector<16x32xf32>
    %177 = arith.mulf %175, %176 : vector<16x32xf32>
    %178 = vector.broadcast %116 : vector<1x32xf32> to vector<16x32xf32>
    %179 = arith.addf %177, %178 : vector<16x32xf32>
    %cst_46 = arith.constant 0.000000e+00 : f32
    %180 = vector.broadcast %cst_46 : f32 to vector<16x32xf32>
    %181 = arith.cmpf ogt, %179, %180 : vector<16x32xf32>
    %182 = vector.broadcast %117 : f32 to vector<16x32xf32>
    %183 = arith.mulf %182, %179 : vector<16x32xf32>
    %184 = arith.select %181, %179, %183 : vector<16x32xi1>, vector<16x32xf32>
    %c0_47 = arith.constant 0 : index
    %c0_48 = arith.constant 0 : index
    %185 = vector.load %arg11[%c0_47, %c0_48] : memref<16x32xf32, #tpu.memory_space<vmem>>, vector<16x32xf32>
    %186 = arith.mulf %184, %185 : vector<16x32xf32>
    %cst_49 = arith.constant dense<0.000000e+00> : vector<16xf32>
    %187 = vector.multi_reduction <add>, %186, %cst_49 [1] : vector<16x32xf32> to vector<16xf32>
    %188 = vector.shape_cast %187 : vector<16xf32> to vector<16x1xf32>
    %c0_50 = arith.constant 0 : index
    %c0_51 = arith.constant 0 : index
    %189 = vector.load %arg12[%c0_50, %c0_51] : memref<2x16xf32, #tpu.memory_space<vmem>>, vector<2x16xf32>
    %cst_52 = arith.constant dense<0.000000e+00> : vector<2x1xf32>
    %190 = tpu.matmul %189, %188, %cst_52 {dimension_numbers = #tpu.dot_dimension_numbers<[1], [0], [0], [1], [0, 0, 1, 1], [], []>} : vector<2x16xf32>, vector<16x1xf32>, vector<2x1xf32> -> vector<2x1xf32>
    %191 = vector.broadcast %118 : f32 to vector<2x1xf32>
    %192 = arith.addf %190, %191 : vector<2x1xf32>
    %193 = arith.negf %192 : vector<2x1xf32>
    %194 = math.exp %193 : vector<2x1xf32>
    %cst_53 = arith.constant 1.000000e+00 : f32
    %195 = vector.broadcast %cst_53 : f32 to vector<2x1xf32>
    %196 = arith.addf %195, %194 : vector<2x1xf32>
    %197 = arith.divf %195, %196 : vector<2x1xf32>
    %c0_54 = arith.constant 0 : index
    %c0_55 = arith.constant 0 : index
    %198 = vector.load %arg14[%c0_54, %c0_55] : memref<2x1xf32, #tpu.memory_space<vmem>>, vector<2x1xf32>
    tpu.vector_store %arg14[%c0_54, %c0_55], %197 {strides = array<i32>} : memref<2x1xf32, #tpu.memory_space<vmem>>, vector<2x1xf32>,
    return
  }
  func.func @transform_0(%arg0: i32) -> (i32, i32) {
    %c0_i32 = arith.constant 0 : i32
    %c0_i32_0 = arith.constant 0 : i32
    %c0_i32_1 = arith.constant 0 : i32
    return %c0_i32, %c0_i32_0 : i32, i32
  }
  func.func @transform_1(%arg0: i32) -> (i32, i32) {
    %c0_i32 = arith.constant 0 : i32
    %c0_i32_0 = arith.constant 0 : i32
    %c0_i32_1 = arith.constant 0 : i32
    return %c0_i32, %c0_i32_0 : i32, i32
  }
  func.func @transform_2(%arg0: i32) -> (i32, i32) {
    %c0_i32 = arith.constant 0 : i32
    %c0_i32_0 = arith.constant 0 : i32
    %c0_i32_1 = arith.constant 0 : i32
    return %c0_i32, %c0_i32_0 : i32, i32
  }
  func.func @transform_3(%arg0: i32) -> (i32, i32) {
    %c0_i32 = arith.constant 0 : i32
    %c0_i32_0 = arith.constant 0 : i32
    %c0_i32_1 = arith.constant 0 : i32
    return %c0_i32, %c0_i32_0 : i32, i32
  }
  func.func @transform_4(%arg0: i32) -> (i32, i32) {
    %c0_i32 = arith.constant 0 : i32
    %c0_i32_0 = arith.constant 0 : i32
    %c0_i32_1 = arith.constant 0 : i32
    return %c0_i32, %c0_i32_0 : i32, i32
  }
  func.func @transform_5(%arg0: i32) -> (i32, i32) {
    %c0_i32 = arith.constant 0 : i32
    %c0_i32_0 = arith.constant 0 : i32
    %c0_i32_1 = arith.constant 0 : i32
    return %c0_i32, %c0_i32_0 : i32, i32
  }
  func.func @transform_6(%arg0: i32) -> (i32, i32) {
    %c0_i32 = arith.constant 0 : i32
    %c0_i32_0 = arith.constant 0 : i32
    %c0_i32_1 = arith.constant 0 : i32
    return %c0_i32, %c0_i32_0 : i32, i32
  }
  func.func @transform_7(%arg0: i32) -> (i32, i32) {
    %c0_i32 = arith.constant 0 : i32
    %c0_i32_0 = arith.constant 0 : i32
    %c0_i32_1 = arith.constant 0 : i32
    return %c0_i32, %c0_i32_0 : i32, i32
  }
  func.func @transform_8(%arg0: i32) -> (i32, i32) {
    %c0_i32 = arith.constant 0 : i32
    %c0_i32_0 = arith.constant 0 : i32
    %c0_i32_1 = arith.constant 0 : i32
    return %c0_i32, %c0_i32_0 : i32, i32
  }
  func.func @transform_9(%arg0: i32) -> (i32, i32) {
    %c0_i32 = arith.constant 0 : i32
    %c0_i32_0 = arith.constant 0 : i32
    %c0_i32_1 = arith.constant 0 : i32
    return %c0_i32, %c0_i32_0 : i32, i32
  }
  func.func @transform_10(%arg0: i32) -> (i32, i32) {
    %c0_i32 = arith.constant 0 : i32
    %c0_i32_0 = arith.constant 0 : i32
    %c0_i32_1 = arith.constant 0 : i32
    return %c0_i32, %c0_i32_0 : i32, i32
  }
  func.func @transform_11(%arg0: i32) -> (i32, i32) {
    %c0_i32 = arith.constant 0 : i32
    %c0_i32_0 = arith.constant 0 : i32
    %c0_i32_1 = arith.constant 0 : i32
    return %c0_i32, %c0_i32_0 : i32, i32
  }
  func.func @transform_12(%arg0: i32) -> i32 {
    %c0_i32 = arith.constant 0 : i32
    %c0_i32_0 = arith.constant 0 : i32
    return %c0_i32 : i32
  }
  func.func @transform_13(%arg0: i32) -> (i32, i32) {
    %c0_i32 = arith.constant 0 : i32
    %c0_i32_0 = arith.constant 0 : i32
    %c0_i32_1 = arith.constant 0 : i32
    return %c0_i32, %c0_i32_0 : i32, i32
  }
}

</mosaic_0001>

<llo_original>
// kernel: tpu_custom_call.1
$region0: #{tpu_custom_call.1}
  #allocation0 [shape = 'u32[]', space=smem, size = 0x4, offset = 0x4, fixed_abs, tag = 'smem constant byte address 0x4 - core index']
  #allocation1 [shape = 'u32[72,128]{1,0:T(1,128)}', space=vmem, size = 0x9000, scoped, tag = 'internal scratch']
  %s0 = inlined_call_operand.hbm [shape: f32[2,256], index: 0, kind: input, shape index: {}]
  %s1 = inlined_call_operand.hbm [shape: f32[256,256], index: 1, kind: input, shape index: {}]
  %s2 = inlined_call_operand.hbm [shape: f32[16,32], index: 2, kind: input, shape index: {}]
  %s3 = inlined_call_operand.vmem [shape: f32[32,96], index: 3, kind: input, shape index: {}]
  %s4 = inlined_call_operand.vmem [shape: f32[1,96], index: 4, kind: input, shape index: {}]
  %s5 = inlined_call_operand.vmem [shape: f32[32,32], index: 5, kind: input, shape index: {}]
  %s6 = inlined_call_operand.vmem [shape: f32[32,64], index: 6, kind: input, shape index: {}]
  %s7 = inlined_call_operand.vmem [shape: f32[1,64], index: 7, kind: input, shape index: {}]
  %s8 = inlined_call_operand.vmem [shape: f32[64,32], index: 8, kind: input, shape index: {}]
  %s9 = inlined_call_operand.hbm [shape: f32[6,32], index: 9, kind: input, shape index: {}]
  %s10 = inlined_call_operand.hbm [shape: f32[16,32], index: 10, kind: input, shape index: {}]
  %s11 = inlined_call_operand.vmem [shape: f32[2,16], index: 11, kind: input, shape index: {}]
  %s12 = inlined_call_operand.vmem [shape: f32[2], index: 12, kind: input, shape index: {}]
  %s13 = inlined_call_operand.vmem [shape: f32[2,1], index: 13, kind: output, shape index: {}]
  %s14 = sld [smem:[#allocation0]]
  $region86: #{tpu_custom_call.1} parent=0
    _
  %s16 = ssub.s32 1, %s14
  %s17 = scalar_select 0, %s16, %s14
  $region1: #{tpu_custom_call.1} parent=0
    #allocation2 [shape = 'u8[2048]{0}', space=vmem, size = 0x800, scoped, tag = 'input window, operand 0, single buffered']
    #allocation3 [shape = 's32[1]{0}', space=sflag, size = 0x4, scoped, tag = 'scoped memory for tpu_custom_call.1']
    #allocation4 [shape = 's32[1]{0}', space=sflag, size = 0x4, scoped, tag = 'scoped memory for tpu_custom_call.1']
    #allocation5 [shape = 'u8[262144]{0}', space=vmem, size = 0x40000, scoped, tag = 'input window, operand 1, single buffered']
    #allocation6 [shape = 's32[1]{0}', space=sflag, size = 0x4, scoped, tag = 'scoped memory for tpu_custom_call.1']
    #allocation7 [shape = 'u8[8192]{0}', space=vmem, size = 0x2000, scoped, tag = 'input window, operand 2, single buffered']
    #allocation8 [shape = 'u8[4096]{0}', space=vmem, size = 0x1000, scoped, tag = 'input window, operand 9, single buffered']
    #allocation9 [shape = 's32[1]{0}', space=sflag, size = 0x4, scoped, tag = 'scoped memory for tpu_custom_call.1']
    #allocation10 [shape = 'u8[8192]{0}', space=vmem, size = 0x2000, scoped, tag = 'input window, operand 10, single buffered']
    #allocation11 [shape = 'u8[512]{0}', space=smem, size = 0x200, scoped, tag = 'input window, operand 12, single buffered']
    %18 = vsyncpa [#allocation3], 0
    %19 = vsyncpa [#allocation6], 0
    %20 = vsyncpa [#allocation9], 0
    %21 = vsyncpa [#allocation4], 0
    // Predicated region
    $region2: #{tpu_custom_call.1} parent=1 // pred_check
      _
    $region3: #{tpu_custom_call.1} parent=1 // pred_check_branch
      %23 = sbr.rel (0) target = $region5
    $region4: #{tpu_custom_call.1} parent=1 // pred_region
      %25 = vsyncadd [#allocation3], 0
      %s27 = sshll.u32 %s0, 4
      %s28 = int_to_ptr.hbm [resolvable:$true] %s27
      %s29 = sshll.u32 [#allocation2], 4
      %s30 = int_to_ptr.vmem [resolvable:$true] %s29
      %32 = dma.hbm_to_vmem [thread:$0]  %s28, 64, %s30, [#allocation3]
    $region5: #{tpu_custom_call.1} parent=1 // pred_fallthru
      _
    // Predicated region
    $region6: #{tpu_custom_call.1} parent=1 // pred_check
      _
    $region7: #{tpu_custom_call.1} parent=1 // pred_check_branch
      %34 = sbr.rel (0) target = $region9
    $region8: #{tpu_custom_call.1} parent=1 // pred_region
      %36 = vsyncadd [#allocation6], 0
      %s37 = sshll.u32 %s1, 4
      %s38 = int_to_ptr.hbm [resolvable:$true] %s37
      %s39 = sshll.u32 [#allocation5], 4
      %s40 = int_to_ptr.vmem [resolvable:$true] %s39
      %45 = dma.hbm_to_vmem [thread:$0]  %s38, 8192, %s40, [#allocation6], 256, 256, 16
    $region9: #{tpu_custom_call.1} parent=1 // pred_fallthru
      _
    // Predicated region
    $region10: #{tpu_custom_call.1} parent=1 // pred_check
      _
    $region11: #{tpu_custom_call.1} parent=1 // pred_check_branch
      %47 = sbr.rel (0) target = $region13
    $region12: #{tpu_custom_call.1} parent=1 // pred_region
      %49 = vsyncadd [#allocation6], 0
      %s50 = sshll.u32 %s2, 4
      %s51 = int_to_ptr.hbm [resolvable:$true] %s50
      %s52 = sshll.u32 [#allocation7], 4
      %s53 = int_to_ptr.vmem [resolvable:$true] %s52
      %58 = dma.hbm_to_vmem [thread:$0]  %s51, 256, %s53, [#allocation6], 128, 128, 8
    $region13: #{tpu_custom_call.1} parent=1 // pred_fallthru
      _
    // Predicated region
    $region14: #{tpu_custom_call.1} parent=1 // pred_check
      _
    $region15: #{tpu_custom_call.1} parent=1 // pred_check_branch
      %60 = sbr.rel (0) target = $region17
    $region16: #{tpu_custom_call.1} parent=1 // pred_region
      _
    $region17: #{tpu_custom_call.1} parent=1 // pred_fallthru
      _
    // Predicated region
    $region18: #{tpu_custom_call.1} parent=1 // pred_check
      _
    $region19: #{tpu_custom_call.1} parent=1 // pred_check_branch
      %62 = sbr.rel (0) target = $region21
    $region20: #{tpu_custom_call.1} parent=1 // pred_region
      _
    $region21: #{tpu_custom_call.1} parent=1 // pred_fallthru
      _
    // Predicated region
    $region22: #{tpu_custom_call.1} parent=1 // pred_check
      _
    $region23: #{tpu_custom_call.1} parent=1 // pred_check_branch
      %64 = sbr.rel (0) target = $region25
    $region24: #{tpu_custom_call.1} parent=1 // pred_region
      _
    $region25: #{tpu_custom_call.1} parent=1 // pred_fallthru
      _
    // Predicated region
    $region26: #{tpu_custom_call.1} parent=1 // pred_check
      _
    $region27: #{tpu_custom_call.1} parent=1 // pred_check_branch
      %66 = sbr.rel (0) target = $region29
    $region28: #{tpu_custom_call.1} parent=1 // pred_region
      _
    $region29: #{tpu_custom_call.1} parent=1 // pred_fallthru
      _
    // Predicated region
    $region30: #{tpu_custom_call.1} parent=1 // pred_check
      _
    $region31: #{tpu_custom_call.1} parent=1 // pred_check_branch
      %68 = sbr.rel (0) target = $region33
    $region32: #{tpu_custom_call.1} parent=1 // pred_region
      _
    $region33: #{tpu_custom_call.1} parent=1 // pred_fallthru
      _
    // Predicated region
    $region34: #{tpu_custom_call.1} parent=1 // pred_check
      _
    $region35: #{tpu_custom_call.1} parent=1 // pred_check_branch
      %70 = sbr.rel (0) target = $region37
    $region36: #{tpu_custom_call.1} parent=1 // pred_region
      _
    $region37: #{tpu_custom_call.1} parent=1 // pred_fallthru
      _
    // Predicated region
    $region38: #{tpu_custom_call.1} parent=1 // pred_check
      _
    $region39: #{tpu_custom_call.1} parent=1 // pred_check_branch
      %72 = sbr.rel (0) target = $region41
    $region40: #{tpu_custom_call.1} parent=1 // pred_region
      %74 = vsyncadd [#allocation9], 0
      %s76 = sshll.u32 %s9, 4
      %s77 = int_to_ptr.hbm [resolvable:$true] %s76
      %s78 = sshll.u32 [#allocation8], 4
      %s79 = int_to_ptr.vmem [resolvable:$true] %s78
      %81 = dma.hbm_to_vmem [thread:$0]  %s77, 128, %s79, [#allocation9]
    $region41: #{tpu_custom_call.1} parent=1 // pred_fallthru
      _
    // Predicated region
    $region42: #{tpu_custom_call.1} parent=1 // pred_check
      _
    $region43: #{tpu_custom_call.1} parent=1 // pred_check_branch
      %83 = sbr.rel (0) target = $region45
    $region44: #{tpu_custom_call.1} parent=1 // pred_region
      %85 = vsyncadd [#allocation9], 0
      %s86 = sshll.u32 %s10, 4
      %s87 = int_to_ptr.hbm [resolvable:$true] %s86
      %s88 = sshll.u32 [#allocation10], 4
      %s89 = int_to_ptr.vmem [resolvable:$true] %s88
      %94 = dma.hbm_to_vmem [thread:$0]  %s87, 256, %s89, [#allocation9], 128, 128, 8
    $region45: #{tpu_custom_call.1} parent=1 // pred_fallthru
      _
    // Predicated region
    $region46: #{tpu_custom_call.1} parent=1 // pred_check
      _
    $region47: #{tpu_custom_call.1} parent=1 // pred_check_branch
      %96 = sbr.rel (0) target = $region49
    $region48: #{tpu_custom_call.1} parent=1 // pred_region
      _
    $region49: #{tpu_custom_call.1} parent=1 // pred_fallthru
      _
    // Predicated region
    $region50: #{tpu_custom_call.1} parent=1 // pred_check
      _
    $region51: #{tpu_custom_call.1} parent=1 // pred_check_branch
      %98 = sbr.rel (0) target = $region53
    $region52: #{tpu_custom_call.1} parent=1 // pred_region
      %100 = vsyncadd [#allocation4], 0
      %s102 = sshll.u32 %s12, 4
      %s103 = int_to_ptr.vmem [resolvable:$true] %s102
      %105 = dma.vmem_to_smem %s103, 16, [#allocation11], [#allocation4]
    $region53: #{tpu_custom_call.1} parent=1 // pred_fallthru
      _
    // Predicated region
    $region54: #{tpu_custom_call.1} parent=1 // pred_check
      _
    $region55: #{tpu_custom_call.1} parent=1 // pred_check_branch
      %107 = sbr.rel (0) target = $region57
    $region56: #{tpu_custom_call.1} parent=1 // pred_region
      %109 = dma.done [#allocation3], 64
    $region57: #{tpu_custom_call.1} parent=1 // pred_fallthru
      _
    // Predicated region
    $region58: #{tpu_custom_call.1} parent=1 // pred_check
      _
    $region59: #{tpu_custom_call.1} parent=1 // pred_check_branch
      %111 = sbr.rel (0) target = $region61
    $region60: #{tpu_custom_call.1} parent=1 // pred_region
      %113 = dma.done [#allocation6], 8192
    $region61: #{tpu_custom_call.1} parent=1 // pred_fallthru
      _
    // Predicated region
    $region62: #{tpu_custom_call.1} parent=1 // pred_check
      _
    $region63: #{tpu_custom_call.1} parent=1 // pred_check_branch
      %115 = sbr.rel (0) target = $region65
    $region64: #{tpu_custom_call.1} parent=1 // pred_region
      %117 = dma.done [#allocation6], 256
    $region65: #{tpu_custom_call.1} parent=1 // pred_fallthru
      _
    // Predicated region
    $region66: #{tpu_custom_call.1} parent=1 // pred_check
      _
    $region67: #{tpu_custom_call.1} parent=1 // pred_check_branch
      %119 = sbr.rel (0) target = $region69
    $region68: #{tpu_custom_call.1} parent=1 // pred_region
      %121 = dma.done [#allocation9], 128
    $region69: #{tpu_custom_call.1} parent=1 // pred_fallthru
      _
    // Predicated region
    $region70: #{tpu_custom_call.1} parent=1 // pred_check
      _
    $region71: #{tpu_custom_call.1} parent=1 // pred_check_branch
      %123 = sbr.rel (0) target = $region73
    $region72: #{tpu_custom_call.1} parent=1 // pred_region
      %125 = dma.done [#allocation9], 256
    $region73: #{tpu_custom_call.1} parent=1 // pred_fallthru
      _
    // Predicated region
    $region74: #{tpu_custom_call.1} parent=1 // pred_check
      _
    $region75: #{tpu_custom_call.1} parent=1 // pred_check_branch
      %127 = sbr.rel (0) target = $region77
    $region76: #{tpu_custom_call.1} parent=1 // pred_region
      %129 = dma.done [#allocation4], 16
    $region77: #{tpu_custom_call.1} parent=1 // pred_fallthru
      _
    %130 = sfence
    %v131 = vld [vmem:[#allocation2] sm:$0xf]
    %v132 = vld [vmem:[#allocation5] sm:$0xff]
    %v133 = vld [vmem:[#allocation5 + $0x8] sm:$0xff]
    %v134 = vld [vmem:[#allocation5 + $0x10] sm:$0xff]
    %v135 = vld [vmem:[#allocation5 + $0x18] sm:$0xff]
    %v136 = vld [vmem:[#allocation5 + $0x20] sm:$0xff]
    %v137 = vld [vmem:[#allocation5 + $0x28] sm:$0xff]
    %v138 = vld [vmem:[#allocation5 + $0x30] sm:$0xff]
    %v139 = vld [vmem:[#allocation5 + $0x38] sm:$0xff]
    %v140 = vld [vmem:[#allocation5 + $0x40] sm:$0xff]
    %v141 = vld [vmem:[#allocation5 + $0x48] sm:$0xff]
    %v142 = vld [vmem:[#allocation5 + $0x50] sm:$0xff]
    %v143 = vld [vmem:[#allocation5 + $0x58] sm:$0xff]
    %v144 = vld [vmem:[#allocation5 + $0x60] sm:$0xff]
    %v145 = vld [vmem:[#allocation5 + $0x68] sm:$0xff]
    %v146 = vld [vmem:[#allocation5 + $0x70] sm:$0xff]
    %v147 = vld [vmem:[#allocation5 + $0x78] sm:$0xff]
    %v148 = vld [vmem:[#allocation5 + $0x80] sm:$0xff]
    %v149 = vld [vmem:[#allocation5 + $0x88] sm:$0xff]
    %v150 = vld [vmem:[#allocation5 + $0x90] sm:$0xff]
    %v151 = vld [vmem:[#allocation5 + $0x98] sm:$0xff]
    %v152 = vld [vmem:[#allocation5 + $0xa0] sm:$0xff]
    %v153 = vld [vmem:[#allocation5 + $0xa8] sm:$0xff]
    %v154 = vld [vmem:[#allocation5 + $0xb0] sm:$0xff]
    %v155 = vld [vmem:[#allocation5 + $0xb8] sm:$0xff]
    %v156 = vld [vmem:[#allocation5 + $0xc0] sm:$0xff]
    %v157 = vld [vmem:[#allocation5 + $0xc8] sm:$0xff]
    %v158 = vld [vmem:[#allocation5 + $0xd0] sm:$0xff]
    %v159 = vld [vmem:[#allocation5 + $0xd8] sm:$0xff]
    %v160 = vld [vmem:[#allocation5 + $0xe0] sm:$0xff]
    %v161 = vld [vmem:[#allocation5 + $0xe8] sm:$0xff]
    %v162 = vld [vmem:[#allocation5 + $0xf0] sm:$0xff]
    %v163 = vld [vmem:[#allocation5 + $0xf8] sm:$0xff]
    %v164 = vld [vmem:[#allocation5 + $0x100] sm:$0xff]
    %v165 = vld [vmem:[#allocation5 + $0x108] sm:$0xff]
    %v166 = vld [vmem:[#allocation5 + $0x110] sm:$0xff]
    %v167 = vld [vmem:[#allocation5 + $0x118] sm:$0xff]
    %v168 = vld [vmem:[#allocation5 + $0x120] sm:$0xff]
    %v169 = vld [vmem:[#allocation5 + $0x128] sm:$0xff]
    %v170 = vld [vmem:[#allocation5 + $0x130] sm:$0xff]
    %v171 = vld [vmem:[#allocation5 + $0x138] sm:$0xff]
    %v172 = vld [vmem:[#allocation5 + $0x140] sm:$0xff]
    %v173 = vld [vmem:[#allocation5 + $0x148] sm:$0xff]
    %v174 = vld [vmem:[#allocation5 + $0x150] sm:$0xff]
    %v175 = vld [vmem:[#allocation5 + $0x158] sm:$0xff]
    %v176 = vld [vmem:[#allocation5 + $0x160] sm:$0xff]
    %v177 = vld [vmem:[#allocation5 + $0x168] sm:$0xff]
    %v178 = vld [vmem:[#allocation5 + $0x170] sm:$0xff]
    %v179 = vld [vmem:[#allocation5 + $0x178] sm:$0xff]
    %v180 = vld [vmem:[#allocation5 + $0x180] sm:$0xff]
    %v181 = vld [vmem:[#allocation5 + $0x188] sm:$0xff]
    %v182 = vld [vmem:[#allocation5 + $0x190] sm:$0xff]
    %v183 = vld [vmem:[#allocation5 + $0x198] sm:$0xff]
    %v184 = vld [vmem:[#allocation5 + $0x1a0] sm:$0xff]
    %v185 = vld [vmem:[#allocation5 + $0x1a8] sm:$0xff]
    %v186 = vld [vmem:[#allocation5 + $0x1b0] sm:$0xff]
    %v187 = vld [vmem:[#allocation5 + $0x1b8] sm:$0xff]
    %v188 = vld [vmem:[#allocation5 + $0x1c0] sm:$0xff]
    %v189 = vld [vmem:[#allocation5 + $0x1c8] sm:$0xff]
    %v190 = vld [vmem:[#allocation5 + $0x1d0] sm:$0xff]
    %v191 = vld [vmem:[#allocation5 + $0x1d8] sm:$0xff]
    %v192 = vld [vmem:[#allocation5 + $0x1e0] sm:$0xff]
    %v193 = vld [vmem:[#allocation5 + $0x1e8] sm:$0xff]
    %v194 = vld [vmem:[#allocation5 + $0x1f0] sm:$0xff]
    %v195 = vld [vmem:[#allocation5 + $0x1f8] sm:$0xff]
    %197 = vst [vmem:[#allocation1] ss:$4 sm:$0xff] %v131
    %v198 = vld.sshfl [vmem:[#allocation1] sm:$0xff pattern:$0x73625140]
    %v199 = vld.sshfl [vmem:[#allocation1 + $0x8] sm:$0xff pattern:$0x73625140]
    %202 = vmatpush.msra.mxu0 %v162
    %203 = vmatpush.msra.mxu0 %v160
    %204 = vmatpush.msra.mxu0 %v158
    %205 = vmatpush.msra.mxu0 %v156
    %206 = vmatpush.msra.mxu0 %v154
    %207 = vmatpush.msra.mxu0 %v152
    %208 = vmatpush.msra.mxu0 %v150
    %209 = vmatpush.msra.mxu0 %v148
    %210 = vmatpush.msra.mxu0 %v146
    %211 = vmatpush.msra.mxu0 %v144
    %212 = vmatpush.msra.mxu0 %v142
    %213 = vmatpush.msra.mxu0 %v140
    %214 = vmatpush.msra.mxu0 %v138
    %215 = vmatpush.msra.mxu0 %v136
    %216 = vmatpush.msra.mxu0 %v134
    %217 = vmatpush.msra.mxu0 %v132
    %218 = vmatmul.f32.gmra.mxu0 %v198
    %v219 = vpop.f32.mrf.mxu0
    %v220 = vadd.f32 0.0, %v219
    %221 = vdwg.mxu0
    %222 = vmatpush.msra.mxu0 %v194
    %223 = vmatpush.msra.mxu0 %v192
    %224 = vmatpush.msra.mxu0 %v190
    %225 = vmatpush.msra.mxu0 %v188
    %226 = vmatpush.msra.mxu0 %v186
    %227 = vmatpush.msra.mxu0 %v184
    %228 = vmatpush.msra.mxu0 %v182
    %229 = vmatpush.msra.mxu0 %v180
    %230 = vmatpush.msra.mxu0 %v178
    %231 = vmatpush.msra.mxu0 %v176
    %232 = vmatpush.msra.mxu0 %v174
    %233 = vmatpush.msra.mxu0 %v172
    %234 = vmatpush.msra.mxu0 %v170
    %235 = vmatpush.msra.mxu0 %v168
    %236 = vmatpush.msra.mxu0 %v166
    %237 = vmatpush.msra.mxu0 %v164
    %238 = vmatmul.f32.gmra.mxu0 %v199
    %v239 = vpop.f32.mrf.mxu0
    %v240 = vadd.f32 %v220, %v239
    %241 = vdwg.mxu0
    %242 = vmatpush.msra.mxu0 %v163
    %243 = vmatpush.msra.mxu0 %v161
    %244 = vmatpush.msra.mxu0 %v159
    %245 = vmatpush.msra.mxu0 %v157
    %246 = vmatpush.msra.mxu0 %v155
    %247 = vmatpush.msra.mxu0 %v153
    %248 = vmatpush.msra.mxu0 %v151
    %249 = vmatpush.msra.mxu0 %v149
    %250 = vmatpush.msra.mxu0 %v147
    %251 = vmatpush.msra.mxu0 %v145
    %252 = vmatpush.msra.mxu0 %v143
    %253 = vmatpush.msra.mxu0 %v141
    %254 = vmatpush.msra.mxu0 %v139
    %255 = vmatpush.msra.mxu0 %v137
    %256 = vmatpush.msra.mxu0 %v135
    %257 = vmatpush.msra.mxu0 %v133
    %258 = vmatmul.f32.gmra.mxu0 %v198
    %v259 = vpop.f32.mrf.mxu0
    %v260 = vadd.f32 0.0, %v259
    %261 = vdwg.mxu0
    %262 = vmatpush.msra.mxu0 %v195
    %263 = vmatpush.msra.mxu0 %v193
    %264 = vmatpush.msra.mxu0 %v191
    %265 = vmatpush.msra.mxu0 %v189
    %266 = vmatpush.msra.mxu0 %v187
    %267 = vmatpush.msra.mxu0 %v185
    %268 = vmatpush.msra.mxu0 %v183
    %269 = vmatpush.msra.mxu0 %v181
    %270 = vmatpush.msra.mxu0 %v179
    %271 = vmatpush.msra.mxu0 %v177
    %272 = vmatpush.msra.mxu0 %v175
    %273 = vmatpush.msra.mxu0 %v173
    %274 = vmatpush.msra.mxu0 %v171
    %275 = vmatpush.msra.mxu0 %v169
    %276 = vmatpush.msra.mxu0 %v167
    %277 = vmatpush.msra.mxu0 %v165
    %278 = vmatmul.f32.gmra.mxu0 %v199
    %v279 = vpop.f32.mrf.mxu0
    %v280 = vadd.f32 %v260, %v279
    %281 = vdwg.mxu0
    %v283 = vrot.slane %v240, 7
    %284 = vrot.lane.b32.xlu0 %v283, 96
    %v285 = vpop.permute.xlu0 %284
    %v287 = vrot.slane %v240, 6
    %288 = vrot.lane.b32.xlu0 %v287, 64
    %v289 = vpop.permute.xlu0 %288
    %v291 = vrot.slane %v240, 5
    %292 = vrot.lane.b32.xlu0 %v291, 32
    %v293 = vpop.permute.xlu0 %292
    %v296 = vrot.slane %v280, 4
    %v298 = vrot.slane %v280, 3
    %299 = vrot.lane.b32.xlu0 %v298, 96
    %v300 = vpop.permute.xlu0 %299
    %v302 = vrot.slane %v280, 2
    %303 = vrot.lane.b32.xlu0 %v302, 64
    %v304 = vpop.permute.xlu0 %303
    %v306 = vrot.slane %v280, 1
    %307 = vrot.lane.b32.xlu0 %v306, 32
    %v308 = vpop.permute.xlu0 %307
    %v310 = vrot.slane %v240, 1
    %312 = vrot.lane.b32.xlu0 %v240, 96
    %v313 = vpop.permute.xlu0 %312
    %315 = vrot.lane.b32.xlu0 %v283, 64
    %v316 = vpop.permute.xlu0 %315
    %318 = vrot.lane.b32.xlu0 %v287, 32
    %v319 = vpop.permute.xlu0 %318
    %v321 = vrot.slane %v280, 5
    %323 = vrot.lane.b32.xlu0 %v296, 96
    %v324 = vpop.permute.xlu0 %323
    %326 = vrot.lane.b32.xlu0 %v298, 64
    %v327 = vpop.permute.xlu0 %326
    %329 = vrot.lane.b32.xlu0 %v302, 32
    %v330 = vpop.permute.xlu0 %329
    %vm332 = vcmask 1040384
    %v333 = vsel %vm332, %v240, %v285
    %vm334 = vcmask 1041408
    %v335 = vsel %vm334, %v333, %v289
    %vm336 = vcmask 1042432
    %v337 = vsel %vm336, %v335, %v293
    %vm338 = vcmask 1043456
    %v339 = vsel %vm338, %v337, %v296
    %vm340 = vcmask 1044480
    %v341 = vsel %vm340, %v339, %v300
    %vm342 = vcmask 1045504
    %v343 = vsel %vm342, %v341, %v304
    %vm344 = vcmask 1046528
    %v345 = vsel %vm344, %v343, %v308
    %v346 = vsel %vm332, %v310, %v313
    %v347 = vsel %vm334, %v346, %v316
    %v348 = vsel %vm336, %v347, %v319
    %v349 = vsel %vm338, %v348, %v321
    %v350 = vsel %vm340, %v349, %v324
    %v351 = vsel %vm342, %v350, %v327
    %v352 = vsel %vm344, %v351, %v330
    %v353 = vld [vmem:[#allocation7] sm:$0xff]
    %v354 = vld [vmem:[#allocation7 + $0x8] sm:$0xff]
    %v355 = vadd.f32 %v345, %v353
    %v356 = vadd.f32 %v352, %v354
    %v357 = vld [vmem:[%s3] sm:$0xff]
    %v358 = vld [vmem:[%s3 + $0x8] sm:$0xff]
    %v359 = vld [vmem:[%s3 + $0x10] sm:$0xff]
    %v360 = vld [vmem:[%s3 + $0x18] sm:$0xff]
    %v361 = vld [vmem:[%s4] sm:$0x1]
    %v363 = vperm.slane %v361, 0
    %vm365 = vcmask 261120
    %v367 = vsel %vm365, %v355, 0
    %v370 = vsel %vm365, %v356, 0
    %372 = vmatpush.msra.mxu0 0.0
    %373 = vmatpush.msra.mxu0 0.0
    %374 = vmatpush.msra.mxu0 0.0
    %375 = vmatpush.msra.mxu0 0.0
    %376 = vmatpush.msra.mxu0 0.0
    %377 = vmatpush.msra.mxu0 0.0
    %378 = vmatpush.msra.mxu0 0.0
    %379 = vmatpush.msra.mxu0 0.0
    %380 = vmatpush.msra.mxu0 0.0
    %381 = vmatpush.msra.mxu0 0.0
    %382 = vmatpush.msra.mxu0 0.0
    %383 = vmatpush.msra.mxu0 0.0
    %384 = vmatpush.msra.mxu0 %v360
    %385 = vmatpush.msra.mxu0 %v359
    %386 = vmatpush.msra.mxu0 %v358
    %387 = vmatpush.msra.mxu0 %v357
    %388 = vmatmul.f32.gmra.mxu0 %v367
    %v389 = vpop.f32.mrf.mxu0
    %v390 = vadd.f32 %v363, %v389
    %391 = vmatmul.f32.gmra.mxu0 %v370
    %v392 = vpop.f32.mrf.mxu0
    %v393 = vadd.f32 %v363, %v392
    %394 = vdwg.mxu0
    %396 = vrot.lane.b32.xlu0 %v390, 120
    %v397 = vpop.permute.xlu0 %396
    %399 = vrot.lane.b32.xlu0 %v393, 120
    %v400 = vpop.permute.xlu0 %399
    %401 = vrot.lane.b32.xlu0 %v390, 112
    %v402 = vpop.permute.xlu0 %401
    %403 = vrot.lane.b32.xlu0 %v393, 112
    %v404 = vpop.permute.xlu0 %403
    %405 = vrot.lane.b32.xlu0 %v390, 104
    %v406 = vpop.permute.xlu0 %405
    %407 = vrot.lane.b32.xlu0 %v393, 104
    %v408 = vpop.permute.xlu0 %407
    %409 = vrot.lane.b32.xlu0 %v390, 96
    %v410 = vpop.permute.xlu0 %409
    %vm411 = vcmask 64512
    %v412 = vsel %vm411, %v390, 0
    %v414 = vsel %vm411, %v410, 0
    %416 = vmatpush.xpose.msra.mxu0 0.0
    %417 = vmatpush.xpose.msra.mxu0 0.0
    %418 = vmatpush.xpose.msra.mxu0 0.0
    %419 = vmatpush.xpose.msra.mxu0 0.0
    %420 = vmatpush.xpose.msra.mxu0 0.0
    %421 = vmatpush.xpose.msra.mxu0 0.0
    %422 = vmatpush.xpose.msra.mxu0 0.0
    %423 = vmatpush.xpose.msra.mxu0 0.0
    %424 = vmatpush.xpose.msra.mxu0 0.0
    %425 = vmatpush.xpose.msra.mxu0 0.0
    %426 = vmatpush.xpose.msra.mxu0 0.0
    %427 = vmatpush.xpose.msra.mxu0 0.0
    %428 = vmatpush.xpose.msra.mxu0 0.0
    %429 = vmatpush.xpose.msra.mxu0 0.0
    %430 = vmatpush.xpose.msra.mxu0 0.0
    %431 = vmatpush.xpose.msra.mxu0 %v414
    %432 = vmatmul.f32.gmra.mxu0 %v412
    %v433 = vpop.f32.mrf.mxu0
    %v434 = vadd.f32 0.0, %v433
    %435 = vdwg.mxu0
    %436 = vrot.lane.b32.xlu0 %v393, 96
    %v437 = vpop.permute.xlu0 %436
    %v438 = vsel %vm411, %v393, 0
    %v440 = vsel %vm411, %v437, 0
    %442 = vmatpush.xpose.msra.mxu0 0.0
    %443 = vmatpush.xpose.msra.mxu0 0.0
    %444 = vmatpush.xpose.msra.mxu0 0.0
    %445 = vmatpush.xpose.msra.mxu0 0.0
    %446 = vmatpush.xpose.msra.mxu0 0.0
    %447 = vmatpush.xpose.msra.mxu0 0.0
    %448 = vmatpush.xpose.msra.mxu0 0.0
    %449 = vmatpush.xpose.msra.mxu0 0.0
    %450 = vmatpush.xpose.msra.mxu0 0.0
    %451 = vmatpush.xpose.msra.mxu0 0.0
    %452 = vmatpush.xpose.msra.mxu0 0.0
    %453 = vmatpush.xpose.msra.mxu0 0.0
    %454 = vmatpush.xpose.msra.mxu0 0.0
    %455 = vmatpush.xpose.msra.mxu0 0.0
    %456 = vmatpush.xpose.msra.mxu0 0.0
    %457 = vmatpush.xpose.msra.mxu0 %v440
    %458 = vmatmul.f32.gmra.mxu0 %v438
    %v459 = vpop.f32.mrf.mxu0
    %v460 = vadd.f32 0.0, %v459
    %461 = vdwg.mxu0
    %462 = vrot.lane.b32.xlu0 %v397, 96
    %v463 = vpop.permute.xlu0 %462
    %v464 = vsel %vm411, %v397, 0
    %v466 = vsel %vm411, %v463, 0
    %468 = vmatpush.xpose.msra.mxu0 0.0
    %469 = vmatpush.xpose.msra.mxu0 0.0
    %470 = vmatpush.xpose.msra.mxu0 0.0
    %471 = vmatpush.xpose.msra.mxu0 0.0
    %472 = vmatpush.xpose.msra.mxu0 0.0
    %473 = vmatpush.xpose.msra.mxu0 0.0
    %474 = vmatpush.xpose.msra.mxu0 0.0
    %475 = vmatpush.xpose.msra.mxu0 0.0
    %476 = vmatpush.xpose.msra.mxu0 0.0
    %477 = vmatpush.xpose.msra.mxu0 0.0
    %478 = vmatpush.xpose.msra.mxu0 0.0
    %479 = vmatpush.xpose.msra.mxu0 0.0
    %480 = vmatpush.xpose.msra.mxu0 0.0
    %481 = vmatpush.xpose.msra.mxu0 0.0
    %482 = vmatpush.xpose.msra.mxu0 0.0
    %483 = vmatpush.xpose.msra.mxu0 %v466
    %484 = vmatmul.f32.gmra.mxu0 %v464
    %v485 = vpop.f32.mrf.mxu0
    %v486 = vadd.f32 0.0, %v485
    %487 = vdwg.mxu0
    %488 = vrot.lane.b32.xlu0 %v400, 96
    %v489 = vpop.permute.xlu0 %488
    %v490 = vsel %vm411, %v400, 0
    %v492 = vsel %vm411, %v489, 0
    %494 = vmatpush.xpose.msra.mxu0 0.0
    %495 = vmatpush.xpose.msra.mxu0 0.0
    %496 = vmatpush.xpose.msra.mxu0 0.0
    %497 = vmatpush.xpose.msra.mxu0 0.0
    %498 = vmatpush.xpose.msra.mxu0 0.0
    %499 = vmatpush.xpose.msra.mxu0 0.0
    %500 = vmatpush.xpose.msra.mxu0 0.0
    %501 = vmatpush.xpose.msra.mxu0 0.0
    %502 = vmatpush.xpose.msra.mxu0 0.0
    %503 = vmatpush.xpose.msra.mxu0 0.0
    %504 = vmatpush.xpose.msra.mxu0 0.0
    %505 = vmatpush.xpose.msra.mxu0 0.0
    %506 = vmatpush.xpose.msra.mxu0 0.0
    %507 = vmatpush.xpose.msra.mxu0 0.0
    %508 = vmatpush.xpose.msra.mxu0 0.0
    %509 = vmatpush.xpose.msra.mxu0 %v492
    %510 = vmatmul.f32.gmra.mxu0 %v490
    %v511 = vpop.f32.mrf.mxu0
    %v512 = vadd.f32 0.0, %v511
    %513 = vdwg.mxu0
    %514 = vrot.lane.b32.xlu0 %v402, 96
    %v515 = vpop.permute.xlu0 %514
    %v516 = vsel %vm411, %v402, 0
    %v518 = vsel %vm411, %v515, 0
    %520 = vmatpush.xpose.msra.mxu0 0.0
    %521 = vmatpush.xpose.msra.mxu0 0.0
    %522 = vmatpush.xpose.msra.mxu0 0.0
    %523 = vmatpush.xpose.msra.mxu0 0.0
    %524 = vmatpush.xpose.msra.mxu0 0.0
    %525 = vmatpush.xpose.msra.mxu0 0.0
    %526 = vmatpush.xpose.msra.mxu0 0.0
    %527 = vmatpush.xpose.msra.mxu0 0.0
    %528 = vmatpush.xpose.msra.mxu0 0.0
    %529 = vmatpush.xpose.msra.mxu0 0.0
    %530 = vmatpush.xpose.msra.mxu0 0.0
    %531 = vmatpush.xpose.msra.mxu0 0.0
    %532 = vmatpush.xpose.msra.mxu0 0.0
    %533 = vmatpush.xpose.msra.mxu0 0.0
    %534 = vmatpush.xpose.msra.mxu0 0.0
    %535 = vmatpush.xpose.msra.mxu0 %v518
    %536 = vmatmul.f32.gmra.mxu0 %v516
    %v537 = vpop.f32.mrf.mxu0
    %v538 = vadd.f32 0.0, %v537
    %539 = vdwg.mxu0
    %540 = vrot.lane.b32.xlu0 %v404, 96
    %v541 = vpop.permute.xlu0 %540
    %v542 = vsel %vm411, %v404, 0
    %v544 = vsel %vm411, %v541, 0
    %546 = vmatpush.xpose.msra.mxu0 0.0
    %547 = vmatpush.xpose.msra.mxu0 0.0
    %548 = vmatpush.xpose.msra.mxu0 0.0
    %549 = vmatpush.xpose.msra.mxu0 0.0
    %550 = vmatpush.xpose.msra.mxu0 0.0
    %551 = vmatpush.xpose.msra.mxu0 0.0
    %552 = vmatpush.xpose.msra.mxu0 0.0
    %553 = vmatpush.xpose.msra.mxu0 0.0
    %554 = vmatpush.xpose.msra.mxu0 0.0
    %555 = vmatpush.xpose.msra.mxu0 0.0
    %556 = vmatpush.xpose.msra.mxu0 0.0
    %557 = vmatpush.xpose.msra.mxu0 0.0
    %558 = vmatpush.xpose.msra.mxu0 0.0
    %559 = vmatpush.xpose.msra.mxu0 0.0
    %560 = vmatpush.xpose.msra.mxu0 0.0
    %561 = vmatpush.xpose.msra.mxu0 %v544
    %562 = vmatmul.f32.gmra.mxu0 %v542
    %v563 = vpop.f32.mrf.mxu0
    %v564 = vadd.f32 0.0, %v563
    %565 = vdwg.mxu0
    %566 = vrot.lane.b32.xlu0 %v406, 96
    %v567 = vpop.permute.xlu0 %566
    %v568 = vsel %vm411, %v406, 0
    %v570 = vsel %vm411, %v567, 0
    %572 = vmatpush.xpose.msra.mxu0 0.0
    %573 = vmatpush.xpose.msra.mxu0 0.0
    %574 = vmatpush.xpose.msra.mxu0 0.0
    %575 = vmatpush.xpose.msra.mxu0 0.0
    %576 = vmatpush.xpose.msra.mxu0 0.0
    %577 = vmatpush.xpose.msra.mxu0 0.0
    %578 = vmatpush.xpose.msra.mxu0 0.0
    %579 = vmatpush.xpose.msra.mxu0 0.0
    %580 = vmatpush.xpose.msra.mxu0 0.0
    %581 = vmatpush.xpose.msra.mxu0 0.0
    %582 = vmatpush.xpose.msra.mxu0 0.0
    %583 = vmatpush.xpose.msra.mxu0 0.0
    %584 = vmatpush.xpose.msra.mxu0 0.0
    %585 = vmatpush.xpose.msra.mxu0 0.0
    %586 = vmatpush.xpose.msra.mxu0 0.0
    %587 = vmatpush.xpose.msra.mxu0 %v570
    %588 = vmatmul.f32.gmra.mxu0 %v568
    %v589 = vpop.f32.mrf.mxu0
    %v590 = vadd.f32 0.0, %v589
    %591 = vdwg.mxu0
    %592 = vrot.lane.b32.xlu0 %v408, 96
    %v593 = vpop.permute.xlu0 %592
    %v594 = vsel %vm411, %v408, 0
    %v596 = vsel %vm411, %v593, 0
    %598 = vmatpush.xpose.msra.mxu0 0.0
    %599 = vmatpush.xpose.msra.mxu0 0.0
    %600 = vmatpush.xpose.msra.mxu0 0.0
    %601 = vmatpush.xpose.msra.mxu0 0.0
    %602 = vmatpush.xpose.msra.mxu0 0.0
    %603 = vmatpush.xpose.msra.mxu0 0.0
    %604 = vmatpush.xpose.msra.mxu0 0.0
    %605 = vmatpush.xpose.msra.mxu0 0.0
    %606 = vmatpush.xpose.msra.mxu0 0.0
    %607 = vmatpush.xpose.msra.mxu0 0.0
    %608 = vmatpush.xpose.msra.mxu0 0.0
    %609 = vmatpush.xpose.msra.mxu0 0.0
    %610 = vmatpush.xpose.msra.mxu0 0.0
    %611 = vmatpush.xpose.msra.mxu0 0.0
    %612 = vmatpush.xpose.msra.mxu0 0.0
    %613 = vmatpush.xpose.msra.mxu0 %v596
    %614 = vmatmul.f32.gmra.mxu0 %v594
    %v615 = vpop.f32.mrf.mxu0
    %v616 = vadd.f32 0.0, %v615
    %617 = vdwg.mxu0
    %v618 = vmul.f32 %v434, 0.35355338
    %v619 = vmul.f32 %v460, 0.35355338
    %v620 = vmul.f32 %v486, 0.35355338
    %v621 = vmul.f32 %v512, 0.35355338
    %v622 = vmul.f32 %v538, 0.35355338
    %v623 = vmul.f32 %v564, 0.35355338
    %v624 = vmul.f32 %v590, 0.35355338
    %v625 = vmul.f32 %v616, 0.35355338
    %v626 = vsel %vm411, %v618, -inf
    %627 = vmax.xlane.f32.xlu0 %v626
    %v628 = vpop.xlane.xlu0 %627
    %v629 = vsel %vm411, %v619, -inf
    %630 = vmax.xlane.f32.xlu0 %v629
    %v631 = vpop.xlane.xlu0 %630
    %v632 = vsel %vm411, %v620, -inf
    %633 = vmax.xlane.f32.xlu0 %v632
    %v634 = vpop.xlane.xlu0 %633
    %v635 = vsel %vm411, %v621, -inf
    %636 = vmax.xlane.f32.xlu0 %v635
    %v637 = vpop.xlane.xlu0 %636
    %v638 = vsel %vm411, %v622, -inf
    %639 = vmax.xlane.f32.xlu0 %v638
    %v640 = vpop.xlane.xlu0 %639
    %v641 = vsel %vm411, %v623, -inf
    %642 = vmax.xlane.f32.xlu0 %v641
    %v643 = vpop.xlane.xlu0 %642
    %v644 = vsel %vm411, %v624, -inf
    %645 = vmax.xlane.f32.xlu0 %v644
    %v646 = vpop.xlane.xlu0 %645
    %v647 = vsel %vm411, %v625, -inf
    %648 = vmax.xlane.f32.xlu0 %v647
    %v649 = vpop.xlane.xlu0 %648
    %v650 = vsub.f32 %v618, %v628
    %v651 = vsub.f32 %v619, %v631
    %v652 = vsub.f32 %v620, %v634
    %v653 = vsub.f32 %v621, %v637
    %v654 = vsub.f32 %v622, %v640
    %v655 = vsub.f32 %v623, %v643
    %v656 = vsub.f32 %v624, %v646
    %v657 = vsub.f32 %v625, %v649
    %v658 = vmul.f32 %v650, 1.442695
    %v659 = vpow.pop %v658
    %v660 = vmul.f32 %v651, 1.442695
    %v661 = vpow.pop %v660
    %v662 = vmul.f32 %v652, 1.442695
    %v663 = vpow.pop %v662
    %v664 = vmul.f32 %v653, 1.442695
    %v665 = vpow.pop %v664
    %v666 = vmul.f32 %v654, 1.442695
    %v667 = vpow.pop %v666
    %v668 = vmul.f32 %v655, 1.442695
    %v669 = vpow.pop %v668
    %v670 = vmul.f32 %v656, 1.442695
    %v671 = vpow.pop %v670
    %v672 = vmul.f32 %v657, 1.442695
    %v673 = vpow.pop %v672
    %v674 = vsel %vm411, %v659, 0.0
    %675 = vadd.xlane.f32.xlu0 %v674
    %v676 = vpop.xlane.xlu0 %675
    %v677 = vsel %vm411, %v661, 0.0
    %678 = vadd.xlane.f32.xlu0 %v677
    %v679 = vpop.xlane.xlu0 %678
    %v680 = vsel %vm411, %v663, 0.0
    %681 = vadd.xlane.f32.xlu0 %v680
    %v682 = vpop.xlane.xlu0 %681
    %v683 = vsel %vm411, %v665, 0.0
    %684 = vadd.xlane.f32.xlu0 %v683
    %v685 = vpop.xlane.xlu0 %684
    %v686 = vsel %vm411, %v667, 0.0
    %687 = vadd.xlane.f32.xlu0 %v686
    %v688 = vpop.xlane.xlu0 %687
    %v689 = vsel %vm411, %v669, 0.0
    %690 = vadd.xlane.f32.xlu0 %v689
    %v691 = vpop.xlane.xlu0 %690
    %v692 = vsel %vm411, %v671, 0.0
    %693 = vadd.xlane.f32.xlu0 %v692
    %v694 = vpop.xlane.xlu0 %693
    %v695 = vsel %vm411, %v673, 0.0
    %696 = vadd.xlane.f32.xlu0 %v695
    %v697 = vpop.xlane.xlu0 %696
    %v698 = vrcp.pop %v676
    %v699 = vrcp.pop %v679
    %v700 = vrcp.pop %v682
    %v701 = vrcp.pop %v685
    %v702 = vrcp.pop %v688
    %v703 = vrcp.pop %v691
    %v704 = vrcp.pop %v694
    %v705 = vrcp.pop %v697
    %v706 = vmul.f32 %v659, %v698
    %v707 = vmul.f32 %v661, %v699
    %v708 = vmul.f32 %v663, %v700
    %v709 = vmul.f32 %v665, %v701
    %v710 = vmul.f32 %v667, %v702
    %v711 = vmul.f32 %v669, %v703
    %v712 = vmul.f32 %v671, %v704
    %v713 = vmul.f32 %v673, %v705
    %714 = vrot.lane.b32.xlu0 %v390, 64
    %v715 = vpop.permute.xlu0 %714
    %v718 = vsel %vm411, %v706, 0
    %720 = vmatpush.msra.mxu0 0.0
    %721 = vmatpush.msra.mxu0 0.0
    %722 = vmatpush.msra.mxu0 0.0
    %723 = vmatpush.msra.mxu0 0.0
    %724 = vmatpush.msra.mxu0 0.0
    %725 = vmatpush.msra.mxu0 0.0
    %726 = vmatpush.msra.mxu0 0.0
    %727 = vmatpush.msra.mxu0 0.0
    %728 = vmatpush.msra.mxu0 0.0
    %729 = vmatpush.msra.mxu0 0.0
    %730 = vmatpush.msra.mxu0 0.0
    %731 = vmatpush.msra.mxu0 0.0
    %732 = vmatpush.msra.mxu0 0.0
    %733 = vmatpush.msra.mxu0 0.0
    %734 = vmatpush.msra.mxu0 0.0
    %735 = vmatpush.msra.mxu0 %v715
    %736 = vmatmul.f32.gmra.mxu0 %v718
    %v737 = vpop.f32.mrf.mxu0
    %v738 = vadd.f32 0.0, %v737
    %739 = vdwg.mxu0
    %740 = vrot.lane.b32.xlu0 %v393, 64
    %v741 = vpop.permute.xlu0 %740
    %v744 = vsel %vm411, %v707, 0
    %746 = vmatpush.msra.mxu0 0.0
    %747 = vmatpush.msra.mxu0 0.0
    %748 = vmatpush.msra.mxu0 0.0
    %749 = vmatpush.msra.mxu0 0.0
    %750 = vmatpush.msra.mxu0 0.0
    %751 = vmatpush.msra.mxu0 0.0
    %752 = vmatpush.msra.mxu0 0.0
    %753 = vmatpush.msra.mxu0 0.0
    %754 = vmatpush.msra.mxu0 0.0
    %755 = vmatpush.msra.mxu0 0.0
    %756 = vmatpush.msra.mxu0 0.0
    %757 = vmatpush.msra.mxu0 0.0
    %758 = vmatpush.msra.mxu0 0.0
    %759 = vmatpush.msra.mxu0 0.0
    %760 = vmatpush.msra.mxu0 0.0
    %761 = vmatpush.msra.mxu0 %v741
    %762 = vmatmul.f32.gmra.mxu0 %v744
    %v763 = vpop.f32.mrf.mxu0
    %v764 = vadd.f32 0.0, %v763
    %765 = vdwg.mxu0
    %766 = vrot.lane.b32.xlu0 %v397, 64
    %v767 = vpop.permute.xlu0 %766
    %v770 = vsel %vm411, %v708, 0
    %772 = vmatpush.msra.mxu0 0.0
    %773 = vmatpush.msra.mxu0 0.0
    %774 = vmatpush.msra.mxu0 0.0
    %775 = vmatpush.msra.mxu0 0.0
    %776 = vmatpush.msra.mxu0 0.0
    %777 = vmatpush.msra.mxu0 0.0
    %778 = vmatpush.msra.mxu0 0.0
    %779 = vmatpush.msra.mxu0 0.0
    %780 = vmatpush.msra.mxu0 0.0
    %781 = vmatpush.msra.mxu0 0.0
    %782 = vmatpush.msra.mxu0 0.0
    %783 = vmatpush.msra.mxu0 0.0
    %784 = vmatpush.msra.mxu0 0.0
    %785 = vmatpush.msra.mxu0 0.0
    %786 = vmatpush.msra.mxu0 0.0
    %787 = vmatpush.msra.mxu0 %v767
    %788 = vmatmul.f32.gmra.mxu0 %v770
    %v789 = vpop.f32.mrf.mxu0
    %v790 = vadd.f32 0.0, %v789
    %791 = vdwg.mxu0
    %792 = vrot.lane.b32.xlu0 %v400, 64
    %v793 = vpop.permute.xlu0 %792
    %v796 = vsel %vm411, %v709, 0
    %798 = vmatpush.msra.mxu0 0.0
    %799 = vmatpush.msra.mxu0 0.0
    %800 = vmatpush.msra.mxu0 0.0
    %801 = vmatpush.msra.mxu0 0.0
    %802 = vmatpush.msra.mxu0 0.0
    %803 = vmatpush.msra.mxu0 0.0
    %804 = vmatpush.msra.mxu0 0.0
    %805 = vmatpush.msra.mxu0 0.0
    %806 = vmatpush.msra.mxu0 0.0
    %807 = vmatpush.msra.mxu0 0.0
    %808 = vmatpush.msra.mxu0 0.0
    %809 = vmatpush.msra.mxu0 0.0
    %810 = vmatpush.msra.mxu0 0.0
    %811 = vmatpush.msra.mxu0 0.0
    %812 = vmatpush.msra.mxu0 0.0
    %813 = vmatpush.msra.mxu0 %v793
    %814 = vmatmul.f32.gmra.mxu0 %v796
    %v815 = vpop.f32.mrf.mxu0
    %v816 = vadd.f32 0.0, %v815
    %817 = vdwg.mxu0
    %818 = vrot.lane.b32.xlu0 %v402, 64
    %v819 = vpop.permute.xlu0 %818
    %v822 = vsel %vm411, %v710, 0
    %824 = vmatpush.msra.mxu0 0.0
    %825 = vmatpush.msra.mxu0 0.0
    %826 = vmatpush.msra.mxu0 0.0
    %827 = vmatpush.msra.mxu0 0.0
    %828 = vmatpush.msra.mxu0 0.0
    %829 = vmatpush.msra.mxu0 0.0
    %830 = vmatpush.msra.mxu0 0.0
    %831 = vmatpush.msra.mxu0 0.0
    %832 = vmatpush.msra.mxu0 0.0
    %833 = vmatpush.msra.mxu0 0.0
    %834 = vmatpush.msra.mxu0 0.0
    %835 = vmatpush.msra.mxu0 0.0
    %836 = vmatpush.msra.mxu0 0.0
    %837 = vmatpush.msra.mxu0 0.0
    %838 = vmatpush.msra.mxu0 0.0
    %839 = vmatpush.msra.mxu0 %v819
    %840 = vmatmul.f32.gmra.mxu0 %v822
    %v841 = vpop.f32.mrf.mxu0
    %v842 = vadd.f32 0.0, %v841
    %843 = vdwg.mxu0
    %844 = vrot.lane.b32.xlu0 %v404, 64
    %v845 = vpop.permute.xlu0 %844
    %v848 = vsel %vm411, %v711, 0
    %850 = vmatpush.msra.mxu0 0.0
    %851 = vmatpush.msra.mxu0 0.0
    %852 = vmatpush.msra.mxu0 0.0
    %853 = vmatpush.msra.mxu0 0.0
    %854 = vmatpush.msra.mxu0 0.0
    %855 = vmatpush.msra.mxu0 0.0
    %856 = vmatpush.msra.mxu0 0.0
    %857 = vmatpush.msra.mxu0 0.0
    %858 = vmatpush.msra.mxu0 0.0
    %859 = vmatpush.msra.mxu0 0.0
    %860 = vmatpush.msra.mxu0 0.0
    %861 = vmatpush.msra.mxu0 0.0
    %862 = vmatpush.msra.mxu0 0.0
    %863 = vmatpush.msra.mxu0 0.0
    %864 = vmatpush.msra.mxu0 0.0
    %865 = vmatpush.msra.mxu0 %v845
    %866 = vmatmul.f32.gmra.mxu0 %v848
    %v867 = vpop.f32.mrf.mxu0
    %v868 = vadd.f32 0.0, %v867
    %869 = vdwg.mxu0
    %870 = vrot.lane.b32.xlu0 %v406, 64
    %v871 = vpop.permute.xlu0 %870
    %v874 = vsel %vm411, %v712, 0
    %876 = vmatpush.msra.mxu0 0.0
    %877 = vmatpush.msra.mxu0 0.0
    %878 = vmatpush.msra.mxu0 0.0
    %879 = vmatpush.msra.mxu0 0.0
    %880 = vmatpush.msra.mxu0 0.0
    %881 = vmatpush.msra.mxu0 0.0
    %882 = vmatpush.msra.mxu0 0.0
    %883 = vmatpush.msra.mxu0 0.0
    %884 = vmatpush.msra.mxu0 0.0
    %885 = vmatpush.msra.mxu0 0.0
    %886 = vmatpush.msra.mxu0 0.0
    %887 = vmatpush.msra.mxu0 0.0
    %888 = vmatpush.msra.mxu0 0.0
    %889 = vmatpush.msra.mxu0 0.0
    %890 = vmatpush.msra.mxu0 0.0
    %891 = vmatpush.msra.mxu0 %v871
    %892 = vmatmul.f32.gmra.mxu0 %v874
    %v893 = vpop.f32.mrf.mxu0
    %v894 = vadd.f32 0.0, %v893
    %895 = vdwg.mxu0
    %896 = vrot.lane.b32.xlu0 %v408, 64
    %v897 = vpop.permute.xlu0 %896
    %v900 = vsel %vm411, %v713, 0
    %902 = vmatpush.msra.mxu0 0.0
    %903 = vmatpush.msra.mxu0 0.0
    %904 = vmatpush.msra.mxu0 0.0
    %905 = vmatpush.msra.mxu0 0.0
    %906 = vmatpush.msra.mxu0 0.0
    %907 = vmatpush.msra.mxu0 0.0
    %908 = vmatpush.msra.mxu0 0.0
    %909 = vmatpush.msra.mxu0 0.0
    %910 = vmatpush.msra.mxu0 0.0
    %911 = vmatpush.msra.mxu0 0.0
    %912 = vmatpush.msra.mxu0 0.0
    %913 = vmatpush.msra.mxu0 0.0
    %914 = vmatpush.msra.mxu0 0.0
    %915 = vmatpush.msra.mxu0 0.0
    %916 = vmatpush.msra.mxu0 0.0
    %917 = vmatpush.msra.mxu0 %v897
    %918 = vmatmul.f32.gmra.mxu0 %v900
    %v919 = vpop.f32.mrf.mxu0
    %v920 = vadd.f32 0.0, %v919
    %921 = vdwg.mxu0
    %923 = vrot.lane.b32.xlu0 %v790, 8
    %v924 = vpop.permute.xlu0 %923
    %927 = vrot.lane.b32.xlu0 %v842, 16
    %v928 = vpop.permute.xlu0 %927
    %931 = vrot.lane.b32.xlu0 %v894, 24
    %v932 = vpop.permute.xlu0 %931
    %v934 = vsel %vm411, %v738, %v924
    %vm935 = vcmask 130048
    %v936 = vsel %vm935, %v934, %v928
    %vm937 = vcmask 195584
    %v938 = vsel %vm937, %v936, %v932
    %940 = vrot.lane.b32.xlu0 %v816, 8
    %v941 = vpop.permute.xlu0 %940
    %944 = vrot.lane.b32.xlu0 %v868, 16
    %v945 = vpop.permute.xlu0 %944
    %948 = vrot.lane.b32.xlu0 %v920, 24
    %v949 = vpop.permute.xlu0 %948
    %v951 = vsel %vm411, %v764, %v941
    %v952 = vsel %vm935, %v951, %v945
    %v953 = vsel %vm937, %v952, %v949
    %v954 = vld [vmem:[#allocation8] sm:$0x1]
    %v955 = vld [vmem:[#allocation8 + $0x1] sm:$0x1]
    %v956 = vld [vmem:[#allocation8 + $0x2] sm:$0x1]
    %v957 = vld [vmem:[#allocation8 + $0x3] sm:$0x1]
    %v958 = vld [vmem:[#allocation8 + $0x4] sm:$0x1]
    %v959 = vld [vmem:[#allocation8 + $0x5] sm:$0x1]
    %s960 = sld [smem:[#allocation11]]
    %s961 = sld [smem:[#allocation11 + $0x1]]
    %v962 = vld [vmem:[%s5] sm:$0xff]
    %v963 = vld [vmem:[%s5 + $0x8] sm:$0xff]
    %v964 = vld [vmem:[%s5 + $0x10] sm:$0xff]
    %v965 = vld [vmem:[%s5 + $0x18] sm:$0xff]
    %v966 = vperm.slane %v954, 0
    %v968 = vsel %vm365, %v938, 0
    %v971 = vsel %vm365, %v953, 0
    %973 = vmatpush.msra.mxu0 0.0
    %974 = vmatpush.msra.mxu0 0.0
    %975 = vmatpush.msra.mxu0 0.0
    %976 = vmatpush.msra.mxu0 0.0
    %977 = vmatpush.msra.mxu0 0.0
    %978 = vmatpush.msra.mxu0 0.0
    %979 = vmatpush.msra.mxu0 0.0
    %980 = vmatpush.msra.mxu0 0.0
    %981 = vmatpush.msra.mxu0 0.0
    %982 = vmatpush.msra.mxu0 0.0
    %983 = vmatpush.msra.mxu0 0.0
    %984 = vmatpush.msra.mxu0 0.0
    %985 = vmatpush.msra.mxu0 %v965
    %986 = vmatpush.msra.mxu0 %v964
    %987 = vmatpush.msra.mxu0 %v963
    %988 = vmatpush.msra.mxu0 %v962
    %989 = vmatmul.f32.gmra.mxu0 %v968
    %v990 = vpop.f32.mrf.mxu0
    %v991 = vadd.f32 %v966, %v990
    %992 = vmatmul.f32.gmra.mxu0 %v971
    %v993 = vpop.f32.mrf.mxu0
    %v994 = vadd.f32 %v966, %v993
    %995 = vdwg.mxu0
    %v996 = vadd.f32 %v355, %v991
    %v997 = vadd.f32 %v356, %v994
    %v998 = vsel %vm365, %v996, 0.0
    %999 = vadd.xlane.f32.xlu0 %v998
    %v1000 = vpop.xlane.xlu0 %999
    %v1001 = vsel %vm365, %v997, 0.0
    %1002 = vadd.xlane.f32.xlu0 %v1001
    %v1003 = vpop.xlane.xlu0 %1002
    %v1004 = vrcp.pop 32.0
    %v1005 = vmul.f32 32.0, %v1004
    %v1006 = vsub.f32 1.0, %v1005
    %v1007 = vmul.f32 %v1004, %v1006
    %v1008 = vadd.f32 %v1004, %v1007
    %vm1009 = vweird.f32 %v1004
    %v1010 = vsel %vm1009, %v1004, %v1008
    %v1011 = vmul.f32 %v1000, %v1010
    %v1012 = vmul.f32 %v1003, %v1010
    %v1013 = vsub.f32 %v996, %v1011
    %v1014 = vsub.f32 %v997, %v1012
    %v1015 = vmul.f32 %v1013, %v1013
    %v1016 = vmul.f32 %v1014, %v1014
    %v1017 = vsel %vm365, %v1015, 0.0
    %1018 = vadd.xlane.f32.xlu0 %v1017
    %v1019 = vpop.xlane.xlu0 %1018
    %v1020 = vsel %vm365, %v1016, 0.0
    %1021 = vadd.xlane.f32.xlu0 %v1020
    %v1022 = vpop.xlane.xlu0 %1021
    %v1023 = vmul.f32 %v1019, %v1010
    %v1024 = vmul.f32 %v1022, %v1010
    %v1025 = vadd.f32 %v1023, 1e-05
    %v1026 = vadd.f32 %v1024, 1e-05
    %v1027 = vrsqrt.pop %v1025
    %v1028 = vmul.f32 %v1027, %v1025
    %v1029 = vmul.f32 %v1028, %v1027
    %v1030 = vmul.f32 0.5, %v1029
    %v1031 = vsub.f32 1.5, %v1030
    %v1032 = vmul.f32 %v1027, %v1031
    %vm1033 = vweird.f32 %v1025
    %vm1034 = vweird.f32 %v1027
    %vm1035 = vmor %vm1033, %vm1034
    %v1036 = vsel %vm1035, %v1027, %v1032
    %v1037 = vrsqrt.pop %v1026
    %v1038 = vmul.f32 %v1037, %v1026
    %v1039 = vmul.f32 %v1038, %v1037
    %v1040 = vmul.f32 0.5, %v1039
    %v1041 = vsub.f32 1.5, %v1040
    %v1042 = vmul.f32 %v1037, %v1041
    %vm1043 = vweird.f32 %v1026
    %vm1044 = vweird.f32 %v1037
    %vm1045 = vmor %vm1043, %vm1044
    %v1046 = vsel %vm1045, %v1037, %v1042
    %v1047 = vmul.f32 %v1013, %v1036
    %v1048 = vmul.f32 %v1014, %v1046
    %v1049 = vperm.slane %v955, 0
    %v1050 = vmul.f32 %v1047, %v1049
    %v1051 = vmul.f32 %v1048, %v1049
    %v1052 = vperm.slane %v956, 0
    %v1053 = vadd.f32 %v1050, %v1052
    %v1054 = vadd.f32 %v1051, %v1052
    %v1055 = vld [vmem:[%s6] sm:$0xff]
    %v1056 = vld [vmem:[%s6 + $0x8] sm:$0xff]
    %v1057 = vld [vmem:[%s6 + $0x10] sm:$0xff]
    %v1058 = vld [vmem:[%s6 + $0x18] sm:$0xff]
    %v1059 = vld [vmem:[%s7] sm:$0x1]
    %v1061 = vperm.slane %v1059, 0
    %v1064 = vsel %vm365, %v1053, 0
    %v1067 = vsel %vm365, %v1054, 0
    %1069 = vmatpush.msra.mxu0 0.0
    %1070 = vmatpush.msra.mxu0 0.0
    %1071 = vmatpush.msra.mxu0 0.0
    %1072 = vmatpush.msra.mxu0 0.0
    %1073 = vmatpush.msra.mxu0 0.0
    %1074 = vmatpush.msra.mxu0 0.0
    %1075 = vmatpush.msra.mxu0 0.0
    %1076 = vmatpush.msra.mxu0 0.0
    %1077 = vmatpush.msra.mxu0 0.0
    %1078 = vmatpush.msra.mxu0 0.0
    %1079 = vmatpush.msra.mxu0 0.0
    %1080 = vmatpush.msra.mxu0 0.0
    %1081 = vmatpush.msra.mxu0 %v1058
    %1082 = vmatpush.msra.mxu0 %v1057
    %1083 = vmatpush.msra.mxu0 %v1056
    %1084 = vmatpush.msra.mxu0 %v1055
    %1085 = vmatmul.f32.gmra.mxu0 %v1064
    %v1086 = vpop.f32.mrf.mxu0
    %v1087 = vadd.f32 %v1061, %v1086
    %1088 = vmatmul.f32.gmra.mxu0 %v1067
    %v1089 = vpop.f32.mrf.mxu0
    %v1090 = vadd.f32 %v1061, %v1089
    %1091 = vdwg.mxu0
    %v1092 = vmax.f32 %v1087, 0.0
    %v1093 = vmax.f32 %v1090, 0.0
    %v1094 = vld [vmem:[%s8] sm:$0xff]
    %v1095 = vld [vmem:[%s8 + $0x8] sm:$0xff]
    %v1096 = vld [vmem:[%s8 + $0x10] sm:$0xff]
    %v1097 = vld [vmem:[%s8 + $0x18] sm:$0xff]
    %v1098 = vld [vmem:[%s8 + $0x20] sm:$0xff]
    %v1099 = vld [vmem:[%s8 + $0x28] sm:$0xff]
    %v1100 = vld [vmem:[%s8 + $0x30] sm:$0xff]
    %v1101 = vld [vmem:[%s8 + $0x38] sm:$0xff]
    %v1102 = vperm.slane %v957, 0
    %vm1103 = vcmask 523264
    %v1105 = vsel %vm1103, %v1092, 0
    %v1108 = vsel %vm1103, %v1093, 0
    %1110 = vmatpush.msra.mxu0 0.0
    %1111 = vmatpush.msra.mxu0 0.0
    %1112 = vmatpush.msra.mxu0 0.0
    %1113 = vmatpush.msra.mxu0 0.0
    %1114 = vmatpush.msra.mxu0 0.0
    %1115 = vmatpush.msra.mxu0 0.0
    %1116 = vmatpush.msra.mxu0 0.0
    %1117 = vmatpush.msra.mxu0 0.0
    %1118 = vmatpush.msra.mxu0 %v1101
    %1119 = vmatpush.msra.mxu0 %v1100
    %1120 = vmatpush.msra.mxu0 %v1099
    %1121 = vmatpush.msra.mxu0 %v1098
    %1122 = vmatpush.msra.mxu0 %v1097
    %1123 = vmatpush.msra.mxu0 %v1096
    %1124 = vmatpush.msra.mxu0 %v1095
    %1125 = vmatpush.msra.mxu0 %v1094
    %1126 = vmatmul.f32.gmra.mxu0 %v1105
    %v1127 = vpop.f32.mrf.mxu0
    %v1128 = vadd.f32 %v1102, %v1127
    %1129 = vmatmul.f32.gmra.mxu0 %v1108
    %v1130 = vpop.f32.mrf.mxu0
    %v1131 = vadd.f32 %v1102, %v1130
    %1132 = vdwg.mxu0
    %v1133 = vadd.f32 %v1053, %v1128
    %v1134 = vadd.f32 %v1054, %v1131
    %v1135 = vsel %vm365, %v1133, 0.0
    %1136 = vadd.xlane.f32.xlu0 %v1135
    %v1137 = vpop.xlane.xlu0 %1136
    %v1138 = vsel %vm365, %v1134, 0.0
    %1139 = vadd.xlane.f32.xlu0 %v1138
    %v1140 = vpop.xlane.xlu0 %1139
    %v1141 = vmul.f32 %v1137, %v1010
    %v1142 = vmul.f32 %v1140, %v1010
    %v1143 = vsub.f32 %v1133, %v1141
    %v1144 = vsub.f32 %v1134, %v1142
    %v1145 = vmul.f32 %v1143, %v1143
    %v1146 = vmul.f32 %v1144, %v1144
    %v1147 = vsel %vm365, %v1145, 0.0
    %1148 = vadd.xlane.f32.xlu0 %v1147
    %v1149 = vpop.xlane.xlu0 %1148
    %v1150 = vsel %vm365, %v1146, 0.0
    %1151 = vadd.xlane.f32.xlu0 %v1150
    %v1152 = vpop.xlane.xlu0 %1151
    %v1153 = vmul.f32 %v1149, %v1010
    %v1154 = vmul.f32 %v1152, %v1010
    %v1155 = vadd.f32 %v1153, 1e-05
    %v1156 = vadd.f32 %v1154, 1e-05
    %v1157 = vrsqrt.pop %v1155
    %v1158 = vmul.f32 %v1157, %v1155
    %v1159 = vmul.f32 %v1158, %v1157
    %v1160 = vmul.f32 0.5, %v1159
    %v1161 = vsub.f32 1.5, %v1160
    %v1162 = vmul.f32 %v1157, %v1161
    %vm1163 = vweird.f32 %v1155
    %vm1164 = vweird.f32 %v1157
    %vm1165 = vmor %vm1163, %vm1164
    %v1166 = vsel %vm1165, %v1157, %v1162
    %v1167 = vrsqrt.pop %v1156
    %v1168 = vmul.f32 %v1167, %v1156
    %v1169 = vmul.f32 %v1168, %v1167
    %v1170 = vmul.f32 0.5, %v1169
    %v1171 = vsub.f32 1.5, %v1170
    %v1172 = vmul.f32 %v1167, %v1171
    %vm1173 = vweird.f32 %v1156
    %vm1174 = vweird.f32 %v1167
    %vm1175 = vmor %vm1173, %vm1174
    %v1176 = vsel %vm1175, %v1167, %v1172
    %v1177 = vmul.f32 %v1143, %v1166
    %v1178 = vmul.f32 %v1144, %v1176
    %v1179 = vperm.slane %v958, 0
    %v1180 = vmul.f32 %v1177, %v1179
    %v1181 = vmul.f32 %v1178, %v1179
    %v1182 = vperm.slane %v959, 0
    %v1183 = vadd.f32 %v1180, %v1182
    %v1184 = vadd.f32 %v1181, %v1182
    %vm1185 = vcmp.gt.f32.partialorder %v1183, 0.0
    %vm1186 = vcmp.gt.f32.partialorder %v1184, 0.0
    %v1187 = vstv %s960
    %v1188 = vmul.f32 %v1187, %v1183
    %v1189 = vmul.f32 %v1187, %v1184
    %v1190 = vsel %vm1185, %v1183, %v1188
    %v1191 = vsel %vm1186, %v1184, %v1189
    %v1192 = vld [vmem:[#allocation10] sm:$0xff]
    %v1193 = vld [vmem:[#allocation10 + $0x8] sm:$0xff]
    %v1194 = vmul.f32 %v1190, %v1192
    %v1195 = vmul.f32 %v1191, %v1193
    %v1196 = vsel %vm365, %v1194, 0.0
    %1197 = vadd.xlane.f32.xlu0 %v1196
    %v1198 = vpop.xlane.xlu0 %1197
    %v1199 = vsel %vm365, %v1195, 0.0
    %1200 = vadd.xlane.f32.xlu0 %v1199
    %v1201 = vpop.xlane.xlu0 %1200
    %v1202 = vld [vmem:[%s11] sm:$0x3]
    %v1203 = vstv %s961
    %v1205 = vsel %vm935, %v1202, 0
    %1207 = vmatpush.msra.mxu0 0.0
    %1208 = vmatpush.msra.mxu0 0.0
    %1209 = vmatpush.msra.mxu0 0.0
    %1210 = vmatpush.msra.mxu0 0.0
    %1211 = vmatpush.msra.mxu0 0.0
    %1212 = vmatpush.msra.mxu0 0.0
    %1213 = vmatpush.msra.mxu0 0.0
    %1214 = vmatpush.msra.mxu0 0.0
    %1215 = vmatpush.msra.mxu0 0.0
    %1216 = vmatpush.msra.mxu0 0.0
    %1217 = vmatpush.msra.mxu0 0.0
    %1218 = vmatpush.msra.mxu0 0.0
    %1219 = vmatpush.msra.mxu0 0.0
    %1220 = vmatpush.msra.mxu0 0.0
    %1221 = vmatpush.msra.mxu0 %v1201
    %1222 = vmatpush.msra.mxu0 %v1198
    %1223 = vmatmul.f32.gmra.mxu0 %v1205
    %v1224 = vpop.f32.mrf.mxu0
    %v1225 = vadd.f32 %v1203, %v1224
    %1226 = vdwg.mxu0
    %v1227 = vxor.u32 %v1225, 2147483648
    %v1228 = vmul.f32 %v1227, 1.442695
    %v1229 = vpow.pop %v1228
    %v1230 = vadd.f32 %v1229, 1.0
    %v1231 = vrcp.pop %v1230
    %v1232 = vmul.f32 %v1230, %v1231
    %v1233 = vsub.f32 1.0, %v1232
    %v1234 = vmul.f32 %v1231, %v1233
    %v1235 = vadd.f32 %v1231, %v1234
    %vm1236 = vweird.f32 %v1230
    %vm1237 = vweird.f32 %v1231
    %vm1238 = vmor %vm1236, %vm1237
    %v1239 = vsel %vm1238, %v1231, %v1235
    %v1240 = vand.u32 2147483647, %v1230
    %vm1241 = vcmp.eq.f32.partialorder %v1240, 8.507059e+37
    %v1242 = vand.u32 %v1230, 2147483648
    %v1243 = vor.u32 1.1754944e-38, %v1242
    %v1244 = vsel %vm1241, %v1243, %v1239
    %v1245 = vmul.f32 1.0, %v1244
    %vm1246 = vcmask 1024
    %1247 = vst.msk [vmem:[%s13] sm:$0x3] %vm1246, %v1245
    // Predicated region
    $region78: #{tpu_custom_call.1} parent=1 // pred_check
      _
    $region79: #{tpu_custom_call.1} parent=1 // pred_check_branch
      %1249 = sbr.rel (0) target = $region81
    $region80: #{tpu_custom_call.1} parent=1 // pred_region
      _
    $region81: #{tpu_custom_call.1} parent=1 // pred_fallthru
      _
    // Predicated region
    $region82: #{tpu_custom_call.1} parent=1 // pred_check
      _
    $region83: #{tpu_custom_call.1} parent=1 // pred_check_branch
      %1251 = sbr.rel (0) target = $region85
    $region84: #{tpu_custom_call.1} parent=1 // pred_region
      _
    $region85: #{tpu_custom_call.1} parent=1 // pred_fallthru
      _
    %1252 = vsyncpa [#allocation3], 1
    %1253 = vsyncpa [#allocation6], 1
    %1254 = vsyncpa [#allocation9], 1
    %1255 = vsyncpa [#allocation4], 1

</llo_original>
